<compile_context>
chip_gen: v7x
topology: tpu7x:2x2x1
jax: 0.10.0
libtpu: 0.0.40
codegen_flags: <defaults>
</compile_context>

<pallas_src>
import functools

import jax
import jax.numpy as jnp
from jax.experimental import pallas as pl
from jax.experimental.pallas import tpu as pltpu

# Padded kernel-facing layout constants (f32 vreg tile is (8, 128)).
HP = 128   # padded hidden width   (lane axis)
IP = 128   # padded layer-input width (embed or hidden; lane axis)
BP = 8     # padded batch          (sublane axis)


# ----------------------------------------------------------------------------
# Fused GRU-stack kernel: one grid step == one GRU layer.
# ----------------------------------------------------------------------------
def _gru_stack_kernel(x_ref, h0_ref, wx_ref, whru_ref, whn_ref, b_ref,
                      out_ref, hlast_ref, xproj_ref, *, seq_len, batch_pad):
    l = pl.program_id(0)

    # Layer 0 consumes the embedded tokens; copy them into the resident
    # output slab so every layer reads its input from the same place.
    @pl.when(l == 0)
    def _():
        out_ref[...] = x_ref[...]

    x_in = out_ref[...]                                         # (S*BP, IP)

    # Hoisted input-side projection for ALL timesteps (+ bias), one MXU
    # matmul per layer: (S*BP, IP) @ (IP, 3*HP), gates [reset|update|new].
    xproj_ref[...] = (
        jnp.dot(x_in, wx_ref[0], preferred_element_type=jnp.float32)
        + b_ref[0]
    )

    whru = whru_ref[0]                                          # (HP, 2*HP)
    whn = whn_ref[0]                                            # (HP, HP)

    def step(t, h):
        row = pl.multiple_of(t * batch_pad, batch_pad)
        gx = xproj_ref[pl.ds(row, batch_pad), :]                # (BP, 3*HP)
        # reset/update share one fused hidden-side matmul (N = 2*HP).
        ru = jax.nn.sigmoid(
            gx[:, : 2 * HP]
            + jnp.dot(h, whru, preferred_element_type=jnp.float32))
        r = ru[:, :HP]
        u = ru[:, HP:]
        n = jnp.tanh(
            gx[:, 2 * HP:]
            + jnp.dot(r * h, whn, preferred_element_type=jnp.float32))
        h_new = n + u * (h - n)                # == u*h + (1-u)*n
        out_ref[pl.ds(row, batch_pad), :] = h_new               # lane-dense (8,128)
        return h_new

    h_last = jax.lax.fori_loop(0, seq_len, step, h0_ref[0], unroll=True)
    hlast_ref[0] = h_last                      # written once per layer


def gru_stack_pallas(x2, h0_p, wx_p, whru_p, whn_p, b_p, *, seq_len):
    """x2: (S*BP, IP) padded embedded inputs; h0_p: (L, BP, HP).
    Returns (last-layer outputs (S*BP, HP), per-layer final hidden (L, BP, HP))."""
    SB = x2.shape[0]
    L = h0_p.shape[0]
    kernel = functools.partial(_gru_stack_kernel, seq_len=seq_len, batch_pad=BP)

    grid_spec = pltpu.PrefetchScalarGridSpec(
        num_scalar_prefetch=0,
        grid=(L,),
        in_specs=[
            pl.BlockSpec((SB, IP), lambda l: (0, 0)),            # embedded x (resident)
            pl.BlockSpec((1, BP, HP), lambda l: (l, 0, 0)),      # h0[l]
            pl.BlockSpec((1, IP, 3 * HP), lambda l: (l, 0, 0)),  # Wx[l]  (gates packed)
            pl.BlockSpec((1, HP, 2 * HP), lambda l: (l, 0, 0)),  # Wh_ru[l]
            pl.BlockSpec((1, HP, HP), lambda l: (l, 0, 0)),      # Wh_n[l]
            pl.BlockSpec((1, 1, 3 * HP), lambda l: (l, 0, 0)),   # bias[l]
        ],
        out_specs=[
            pl.BlockSpec((SB, HP), lambda l: (0, 0)),            # outputs (resident slab)
            pl.BlockSpec((1, BP, HP), lambda l: (l, 0, 0)),      # final hidden per layer
        ],
        scratch_shapes=[pltpu.VMEM((SB, 3 * HP), jnp.float32)],  # x-side gate preacts
    )

    outputs, hlast = pl.pallas_call(
        kernel,
        out_shape=(
            jax.ShapeDtypeStruct((SB, HP), jnp.float32),
            jax.ShapeDtypeStruct((L, BP, HP), jnp.float32),
        ),
        grid_spec=grid_spec,
        compiler_params=pltpu.CompilerParams(
            dimension_semantics=("arbitrary",),   # layers are sequential
        ),
    )(x2, h0_p, wx_p, whru_p, whn_p, b_p)
    return outputs, hlast


# ----------------------------------------------------------------------------
# Parameter construction (PyTorch-shaped) + kernel-layout packing
# ----------------------------------------------------------------------------
def pack_gru_params(layers, hidden_size):
    """Pack per-layer (wxr, whr, br, wxu, whu, bu, wxn, whn, bn) into padded,
    gate-concatenated kernel weights.  Gate g occupies lanes [g*HP, g*HP+H)."""
    H = hidden_size
    wx_all, whru_all, whn_all, b_all = [], [], [], []
    for layer in layers:
        wxr, whr, br, wxu, whu, bu, wxn, whn, bn = layer
        in_size = wxr.shape[0]

        wx_p = jnp.zeros((IP, 3 * HP), jnp.float32)
        wx_p = wx_p.at[:in_size, 0:H].set(wxr)
        wx_p = wx_p.at[:in_size, HP:HP + H].set(wxu)
        wx_p = wx_p.at[:in_size, 2 * HP:2 * HP + H].set(wxn)

        whru_p = jnp.zeros((HP, 2 * HP), jnp.float32)
        whru_p = whru_p.at[:H, 0:H].set(whr)
        whru_p = whru_p.at[:H, HP:HP + H].set(whu)

        whn_p = jnp.zeros((HP, HP), jnp.float32).at[:H, :H].set(whn)

        b_p = jnp.zeros((1, 3 * HP), jnp.float32)
        b_p = b_p.at[0, 0:H].set(br)
        b_p = b_p.at[0, HP:HP + H].set(bu)
        b_p = b_p.at[0, 2 * HP:2 * HP + H].set(bn)

        wx_all.append(wx_p)
        whru_all.append(whru_p)
        whn_all.append(whn_p)
        b_all.append(b_p)

    return (jnp.stack(wx_all), jnp.stack(whru_all),
            jnp.stack(whn_all), jnp.stack(b_all))


def init_encoder_params(key, vocab_size, embed_size, hidden_size, num_layers,
                        padding_index):
    def uniform(k, shape, bound):
        return jax.random.uniform(k, shape, jnp.float32, -bound, bound)

    keys = jax.random.split(key, 3 + num_layers)

    # nn.Embedding(vocab, embed, padding_idx): N(0,1) init, padding row zeroed.
    embedding = jax.random.normal(keys[0], (vocab_size, embed_size), jnp.float32)
    embedding = embedding.at[padding_index].set(0.0)

    # GRU layers: each has 3 nn.Linear(in_size + hidden, hidden).
    layers = []
    for l in range(num_layers):
        in_size = embed_size if l == 0 else hidden_size
        combined = in_size + hidden_size
        bound = 1.0 / float(combined) ** 0.5
        sub = jax.random.split(keys[1 + l], 6)
        layer = []
        for g in range(3):  # reset, update, new
            w = uniform(sub[2 * g], (hidden_size, combined), bound)  # torch layout
            b = uniform(sub[2 * g + 1], (hidden_size,), bound)
            wx = w[:, :in_size].T            # (I, H)
            wh = w[:, in_size:].T            # (H, H)
            layer.extend([wx, wh, b])
        layers.append(tuple(layer))

    # linear_summary: nn.Linear(hidden, hidden)
    bound = 1.0 / float(hidden_size) ** 0.5
    ws = uniform(keys[1 + num_layers], (hidden_size, hidden_size), bound)
    bs = uniform(keys[2 + num_layers], (hidden_size,), bound)

    return {
        "embedding": embedding,
        "gru_layers": layers,
        "summary_w_t": ws.T,                 # (H, H), pre-transposed
        "summary_b": bs,                     # (H,)
        "packed": pack_gru_params(layers, hidden_size),
    }


# ----------------------------------------------------------------------------
# Encoder forward
# ----------------------------------------------------------------------------
def encoder_forward(params, tokens, hidden=None):
    """tokens: (seq_len, batch) int32.
    Returns (output (S,B,H), hidden (L,B,H), summary (L,B,H))."""
    S, B = tokens.shape
    L = len(params["gru_layers"])
    H = params["summary_w_t"].shape[0]
    E = params["embedding"].shape[1]
    assert B <= BP and E <= IP and H <= HP, "shapes exceed padded kernel layout"

    # Embedding lookup (plain-JAX glue) + pad to kernel layout.
    embedded = jnp.take(params["embedding"], tokens, axis=0)        # (S, B, E)
    x_pad = jnp.zeros((S, BP, IP), jnp.float32).at[:, :B, :E].set(embedded)
    x2 = x_pad.reshape(S * BP, IP)

    h0_p = jnp.zeros((L, BP, HP), jnp.float32)
    if hidden is not None:
        h0_p = h0_p.at[:, :B, :H].set(hidden)

    wx_p, whru_p, whn_p, b_p = params["packed"]
    outputs2, hlast_p = gru_stack_pallas(x2, h0_p, wx_p, whru_p, whn_p, b_p,
                                         seq_len=S)

    output = outputs2.reshape(S, BP, HP)[:, :B, :H]
    next_hidden = hlast_p[:, :B, :H]
    # Summary projection is tiny ((L*B, H) = (4, 32)); plain XLA fuses it.
    summary = jnp.tanh(next_hidden @ params["summary_w_t"] + params["summary_b"])
    return output, next_hidden, summary


# ----------------------------------------------------------------------------
# Pure-JAX reference (mirrors the PyTorch loop) for a correctness check
# ----------------------------------------------------------------------------
def encoder_forward_ref(params, tokens):
    S, B = tokens.shape
    H = params["summary_w_t"].shape[0]
    x = jnp.take(params["embedding"], tokens, axis=0)
    hiddens = []
    for layer in params["gru_layers"]:
        wxr, whr, br, wxu, whu, bu, wxn, whn, bn = layer
        h = jnp.zeros((B, H), jnp.float32)
        outs = []
        for t in range(S):
            xt = x[t]
            r = jax.nn.sigmoid(xt @ wxr + h @ whr + br)
            u = jax.nn.sigmoid(xt @ wxu + h @ whu + bu)
            n = jnp.tanh(xt @ wxn + (r * h) @ whn + bn)
            h = u * h + (1.0 - u) * n
            outs.append(h)
        x = jnp.stack(outs, axis=0)
        hiddens.append(h)
    hiddens = jnp.stack(hiddens, axis=0)
    summary = jnp.tanh(hiddens @ params["summary_w_t"] + params["summary_b"])
    return x, hiddens, summary


# ----------------------------------------------------------------------------
if __name__ == "__main__":
    vocab_size = 20
    embed_size = 16
    hidden_size = 32
    num_rnn_layers = 2
    padding_index = 0
    seq_len = 8
    batch_size = 2

    key = jax.random.PRNGKey(0)
    pkey, tkey = jax.random.split(key)
    params = init_encoder_params(pkey, vocab_size, embed_size, hidden_size,
                                 num_rnn_layers, padding_index)
    tokens = jax.random.randint(tkey, (seq_len, batch_size), 0, vocab_size,
                                dtype=jnp.int32)

    fwd = jax.jit(functools.partial(encoder_forward, params))
    output, hidden, summary = fwd(tokens)
    jax.block_until_ready((output, hidden, summary))

    out_ref, hid_ref, sum_ref = encoder_forward_ref(params, tokens)

    assert output.shape == (seq_len, batch_size, hidden_size)
    assert hidden.shape == (num_rnn_layers, batch_size, hidden_size)
    assert summary.shape == (num_rnn_layers, batch_size, hidden_size)
    assert jnp.allclose(output, out_ref, atol=1e-4), "output mismatch"
    assert jnp.allclose(hidden, hid_ref, atol=1e-4), "hidden mismatch"
    assert jnp.allclose(summary, sum_ref, atol=1e-4), "summary mismatch"

    print("KERNEL_OK")
</pallas_src>

<mosaic_0001>
module attributes {stable_mosaic.version = 11 : i64} {
  func.func @_gru_stack_kernel(%arg0: i32, %arg1: memref<64x128xf32, #tpu.memory_space<vmem>>, %arg2: memref<1x8x128xf32, #tpu.memory_space<vmem>>, %arg3: memref<1x128x384xf32, #tpu.memory_space<vmem>>, %arg4: memref<1x128x256xf32, #tpu.memory_space<vmem>>, %arg5: memref<1x128x128xf32, #tpu.memory_space<vmem>>, %arg6: memref<1x1x384xf32, #tpu.memory_space<vmem>>, %arg7: memref<64x128xf32, #tpu.memory_space<vmem>>, %arg8: memref<1x8x128xf32, #tpu.memory_space<vmem>>, %arg9: memref<64x384xf32, #tpu.memory_space<vmem>>) attributes {dimension_semantics = [#tpu.dimension_semantics<arbitrary>], iteration_bounds = array<i64: 2>, scalar_prefetch = 0 : i64, scratch_operands = 1 : i64, tpu.core_type = #tpu.core_type<tc>, window_params = [{pipeline_mode = #tpu.pipeline_mode<synchronous>, transform_indices = @transform_0, window_bounds = array<i64: 64, 128>}, {transform_indices = @transform_1, window_bounds = array<i64: 1, 8, 128>}, {transform_indices = @transform_2, window_bounds = array<i64: 1, 128, 384>}, {transform_indices = @transform_3, window_bounds = array<i64: 1, 128, 256>}, {transform_indices = @transform_4, window_bounds = array<i64: 1, 128, 128>}, {transform_indices = @transform_5, window_bounds = array<i64: 1, 1, 384>}, {pipeline_mode = #tpu.pipeline_mode<synchronous>, transform_indices = @transform_6, window_bounds = array<i64: 64, 128>}, {transform_indices = @transform_7, window_bounds = array<i64: 1, 8, 128>}]} {
    %c0_i32 = arith.constant 0 : i32
    %0 = arith.cmpi eq, %arg0, %c0_i32 : i32
    %1 = arith.extui %0 : i1 to i32
    %c0_i32_0 = arith.constant 0 : i32
    %2 = arith.cmpi ne, %1, %c0_i32_0 : i32
    scf.if %2 {
      %c0_71 = arith.constant 0 : index
      %c0_72 = arith.constant 0 : index
      %213 = vector.load %arg1[%c0_71, %c0_72] : memref<64x128xf32, #tpu.memory_space<vmem>>, vector<64x128xf32>
      %c0_73 = arith.constant 0 : index
      %c0_74 = arith.constant 0 : index
      %214 = vector.load %arg7[%c0_73, %c0_74] : memref<64x128xf32, #tpu.memory_space<vmem>>, vector<64x128xf32>
      tpu.vector_store %arg7[%c0_73, %c0_74], %213 {strides = array<i32>} : memref<64x128xf32, #tpu.memory_space<vmem>>, vector<64x128xf32>,
    } else {
    }
    %c0 = arith.constant 0 : index
    %c0_1 = arith.constant 0 : index
    %3 = vector.load %arg7[%c0, %c0_1] : memref<64x128xf32, #tpu.memory_space<vmem>>, vector<64x128xf32>
    %c0_2 = arith.constant 0 : index
    %c0_3 = arith.constant 0 : index
    %c0_4 = arith.constant 0 : index
    %4 = vector.load %arg3[%c0_2, %c0_3, %c0_4] : memref<1x128x384xf32, #tpu.memory_space<vmem>>, vector<1x128x384xf32>
    %5 = vector.shape_cast %4 : vector<1x128x384xf32> to vector<128x384xf32>
    %cst = arith.constant dense<0.000000e+00> : vector<64x384xf32>
    %6 = tpu.matmul %3, %5, %cst {dimension_numbers = #tpu.dot_dimension_numbers<[1], [0], [0], [1], [0, 0, 1, 1], [], []>} : vector<64x128xf32>, vector<128x384xf32>, vector<64x384xf32> -> vector<64x384xf32>
    %c0_5 = arith.constant 0 : index
    %c0_6 = arith.constant 0 : index
    %c0_7 = arith.constant 0 : index
    %7 = vector.load %arg6[%c0_5, %c0_6, %c0_7] : memref<1x1x384xf32, #tpu.memory_space<vmem>>, vector<1x1x384xf32>
    %8 = vector.shape_cast %7 : vector<1x1x384xf32> to vector<1x384xf32>
    %9 = vector.broadcast %8 : vector<1x384xf32> to vector<64x384xf32>
    %10 = arith.addf %6, %9 : vector<64x384xf32>
    %c0_8 = arith.constant 0 : index
    %c0_9 = arith.constant 0 : index
    %11 = vector.load %arg9[%c0_8, %c0_9] : memref<64x384xf32, #tpu.memory_space<vmem>>, vector<64x384xf32>
    tpu.vector_store %arg9[%c0_8, %c0_9], %10 {strides = array<i32>} : memref<64x384xf32, #tpu.memory_space<vmem>>, vector<64x384xf32>,
    %c0_10 = arith.constant 0 : index
    %c0_11 = arith.constant 0 : index
    %c0_12 = arith.constant 0 : index
    %12 = vector.load %arg4[%c0_10, %c0_11, %c0_12] : memref<1x128x256xf32, #tpu.memory_space<vmem>>, vector<1x128x256xf32>
    %13 = vector.shape_cast %12 : vector<1x128x256xf32> to vector<128x256xf32>
    %c0_13 = arith.constant 0 : index
    %c0_14 = arith.constant 0 : index
    %c0_15 = arith.constant 0 : index
    %14 = vector.load %arg5[%c0_13, %c0_14, %c0_15] : memref<1x128x128xf32, #tpu.memory_space<vmem>>, vector<1x128x128xf32>
    %15 = vector.shape_cast %14 : vector<1x128x128xf32> to vector<128x128xf32>
    %c0_16 = arith.constant 0 : index
    %c0_17 = arith.constant 0 : index
    %c0_18 = arith.constant 0 : index
    %16 = vector.load %arg2[%c0_16, %c0_17, %c0_18] : memref<1x8x128xf32, #tpu.memory_space<vmem>>, vector<1x8x128xf32>
    %17 = vector.shape_cast %16 : vector<1x8x128xf32> to vector<8x128xf32>
    %c0_i32_19 = arith.constant 0 : i32
    %c8_i32 = arith.constant 8 : i32
    %18 = arith.muli %c0_i32_19, %c8_i32 : i32
    %19 = tpu.assume_multiple %18, 8 : i32
    %20 = arith.index_cast %19 : i32 to index
    %c0_20 = arith.constant 0 : index
    %21 = vector.load %arg9[%20, %c0_20] : memref<64x384xf32, #tpu.memory_space<vmem>>, vector<8x384xf32>
    %22 = vector.extract_strided_slice %21 {offsets = [0, 0], sizes = [8, 256], strides = [1, 1]} : vector<8x384xf32> to vector<8x256xf32>
    %cst_21 = arith.constant dense<0.000000e+00> : vector<8x256xf32>
    %23 = tpu.matmul %17, %13, %cst_21 {dimension_numbers = #tpu.dot_dimension_numbers<[1], [0], [0], [1], [0, 0, 1, 1], [], []>} : vector<8x128xf32>, vector<128x256xf32>, vector<8x256xf32> -> vector<8x256xf32>
    %24 = arith.addf %22, %23 : vector<8x256xf32>
    %25 = arith.negf %24 : vector<8x256xf32>
    %26 = math.exp %25 : vector<8x256xf32>
    %cst_22 = arith.constant 1.000000e+00 : f32
    %27 = vector.broadcast %cst_22 : f32 to vector<8x256xf32>
    %28 = arith.addf %27, %26 : vector<8x256xf32>
    %29 = arith.divf %27, %28 : vector<8x256xf32>
    %30 = vector.extract_strided_slice %29 {offsets = [0, 0], sizes = [8, 128], strides = [1, 1]} : vector<8x256xf32> to vector<8x128xf32>
    %31 = vector.extract_strided_slice %29 {offsets = [0, 128], sizes = [8, 128], strides = [1, 1]} : vector<8x256xf32> to vector<8x128xf32>
    %32 = vector.extract_strided_slice %21 {offsets = [0, 256], sizes = [8, 128], strides = [1, 1]} : vector<8x384xf32> to vector<8x128xf32>
    %33 = arith.mulf %30, %17 : vector<8x128xf32>
    %cst_23 = arith.constant dense<0.000000e+00> : vector<8x128xf32>
    %34 = tpu.matmul %33, %15, %cst_23 {dimension_numbers = #tpu.dot_dimension_numbers<[1], [0], [0], [1], [0, 0, 1, 1], [], []>} : vector<8x128xf32>, vector<128x128xf32>, vector<8x128xf32> -> vector<8x128xf32>
    %35 = arith.addf %32, %34 : vector<8x128xf32>
    %36 = math.tanh %35 : vector<8x128xf32>
    %37 = arith.subf %17, %36 : vector<8x128xf32>
    %38 = arith.mulf %31, %37 : vector<8x128xf32>
    %39 = arith.addf %36, %38 : vector<8x128xf32>
    %40 = arith.index_cast %19 : i32 to index
    %c0_24 = arith.constant 0 : index
    %41 = vector.load %arg7[%40, %c0_24] : memref<64x128xf32, #tpu.memory_space<vmem>>, vector<8x128xf32>
    tpu.vector_store %arg7[%40, %c0_24], %39 {strides = array<i32>} : memref<64x128xf32, #tpu.memory_space<vmem>>, vector<8x128xf32>,
    %c1_i32 = arith.constant 1 : i32
    %c8_i32_25 = arith.constant 8 : i32
    %42 = arith.muli %c1_i32, %c8_i32_25 : i32
    %43 = tpu.assume_multiple %42, 8 : i32
    %44 = arith.index_cast %43 : i32 to index
    %c0_26 = arith.constant 0 : index
    %45 = vector.load %arg9[%44, %c0_26] : memref<64x384xf32, #tpu.memory_space<vmem>>, vector<8x384xf32>
    %46 = vector.extract_strided_slice %45 {offsets = [0, 0], sizes = [8, 256], strides = [1, 1]} : vector<8x384xf32> to vector<8x256xf32>
    %cst_27 = arith.constant dense<0.000000e+00> : vector<8x256xf32>
    %47 = tpu.matmul %39, %13, %cst_27 {dimension_numbers = #tpu.dot_dimension_numbers<[1], [0], [0], [1], [0, 0, 1, 1], [], []>} : vector<8x128xf32>, vector<128x256xf32>, vector<8x256xf32> -> vector<8x256xf32>
    %48 = arith.addf %46, %47 : vector<8x256xf32>
    %49 = arith.negf %48 : vector<8x256xf32>
    %50 = math.exp %49 : vector<8x256xf32>
    %cst_28 = arith.constant 1.000000e+00 : f32
    %51 = vector.broadcast %cst_28 : f32 to vector<8x256xf32>
    %52 = arith.addf %51, %50 : vector<8x256xf32>
    %53 = arith.divf %51, %52 : vector<8x256xf32>
    %54 = vector.extract_strided_slice %53 {offsets = [0, 0], sizes = [8, 128], strides = [1, 1]} : vector<8x256xf32> to vector<8x128xf32>
    %55 = vector.extract_strided_slice %53 {offsets = [0, 128], sizes = [8, 128], strides = [1, 1]} : vector<8x256xf32> to vector<8x128xf32>
    %56 = vector.extract_strided_slice %45 {offsets = [0, 256], sizes = [8, 128], strides = [1, 1]} : vector<8x384xf32> to vector<8x128xf32>
    %57 = arith.mulf %54, %39 : vector<8x128xf32>
    %cst_29 = arith.constant dense<0.000000e+00> : vector<8x128xf32>
    %58 = tpu.matmul %57, %15, %cst_29 {dimension_numbers = #tpu.dot_dimension_numbers<[1], [0], [0], [1], [0, 0, 1, 1], [], []>} : vector<8x128xf32>, vector<128x128xf32>, vector<8x128xf32> -> vector<8x128xf32>
    %59 = arith.addf %56, %58 : vector<8x128xf32>
    %60 = math.tanh %59 : vector<8x128xf32>
    %61 = arith.subf %39, %60 : vector<8x128xf32>
    %62 = arith.mulf %55, %61 : vector<8x128xf32>
    %63 = arith.addf %60, %62 : vector<8x128xf32>
    %64 = arith.index_cast %43 : i32 to index
    %c0_30 = arith.constant 0 : index
    %65 = vector.load %arg7[%64, %c0_30] : memref<64x128xf32, #tpu.memory_space<vmem>>, vector<8x128xf32>
    tpu.vector_store %arg7[%64, %c0_30], %63 {strides = array<i32>} : memref<64x128xf32, #tpu.memory_space<vmem>>, vector<8x128xf32>,
    %c2_i32 = arith.constant 2 : i32
    %c8_i32_31 = arith.constant 8 : i32
    %66 = arith.muli %c2_i32, %c8_i32_31 : i32
    %67 = tpu.assume_multiple %66, 8 : i32
    %68 = arith.index_cast %67 : i32 to index
    %c0_32 = arith.constant 0 : index
    %69 = vector.load %arg9[%68, %c0_32] : memref<64x384xf32, #tpu.memory_space<vmem>>, vector<8x384xf32>
    %70 = vector.extract_strided_slice %69 {offsets = [0, 0], sizes = [8, 256], strides = [1, 1]} : vector<8x384xf32> to vector<8x256xf32>
    %cst_33 = arith.constant dense<0.000000e+00> : vector<8x256xf32>
    %71 = tpu.matmul %63, %13, %cst_33 {dimension_numbers = #tpu.dot_dimension_numbers<[1], [0], [0], [1], [0, 0, 1, 1], [], []>} : vector<8x128xf32>, vector<128x256xf32>, vector<8x256xf32> -> vector<8x256xf32>
    %72 = arith.addf %70, %71 : vector<8x256xf32>
    %73 = arith.negf %72 : vector<8x256xf32>
    %74 = math.exp %73 : vector<8x256xf32>
    %cst_34 = arith.constant 1.000000e+00 : f32
    %75 = vector.broadcast %cst_34 : f32 to vector<8x256xf32>
    %76 = arith.addf %75, %74 : vector<8x256xf32>
    %77 = arith.divf %75, %76 : vector<8x256xf32>
    %78 = vector.extract_strided_slice %77 {offsets = [0, 0], sizes = [8, 128], strides = [1, 1]} : vector<8x256xf32> to vector<8x128xf32>
    %79 = vector.extract_strided_slice %77 {offsets = [0, 128], sizes = [8, 128], strides = [1, 1]} : vector<8x256xf32> to vector<8x128xf32>
    %80 = vector.extract_strided_slice %69 {offsets = [0, 256], sizes = [8, 128], strides = [1, 1]} : vector<8x384xf32> to vector<8x128xf32>
    %81 = arith.mulf %78, %63 : vector<8x128xf32>
    %cst_35 = arith.constant dense<0.000000e+00> : vector<8x128xf32>
    %82 = tpu.matmul %81, %15, %cst_35 {dimension_numbers = #tpu.dot_dimension_numbers<[1], [0], [0], [1], [0, 0, 1, 1], [], []>} : vector<8x128xf32>, vector<128x128xf32>, vector<8x128xf32> -> vector<8x128xf32>
    %83 = arith.addf %80, %82 : vector<8x128xf32>
    %84 = math.tanh %83 : vector<8x128xf32>
    %85 = arith.subf %63, %84 : vector<8x128xf32>
    %86 = arith.mulf %79, %85 : vector<8x128xf32>
    %87 = arith.addf %84, %86 : vector<8x128xf32>
    %88 = arith.index_cast %67 : i32 to index
    %c0_36 = arith.constant 0 : index
    %89 = vector.load %arg7[%88, %c0_36] : memref<64x128xf32, #tpu.memory_space<vmem>>, vector<8x128xf32>
    tpu.vector_store %arg7[%88, %c0_36], %87 {strides = array<i32>} : memref<64x128xf32, #tpu.memory_space<vmem>>, vector<8x128xf32>,
    %c3_i32 = arith.constant 3 : i32
    %c8_i32_37 = arith.constant 8 : i32
    %90 = arith.muli %c3_i32, %c8_i32_37 : i32
    %91 = tpu.assume_multiple %90, 8 : i32
    %92 = arith.index_cast %91 : i32 to index
    %c0_38 = arith.constant 0 : index
    %93 = vector.load %arg9[%92, %c0_38] : memref<64x384xf32, #tpu.memory_space<vmem>>, vector<8x384xf32>
    %94 = vector.extract_strided_slice %93 {offsets = [0, 0], sizes = [8, 256], strides = [1, 1]} : vector<8x384xf32> to vector<8x256xf32>
    %cst_39 = arith.constant dense<0.000000e+00> : vector<8x256xf32>
    %95 = tpu.matmul %87, %13, %cst_39 {dimension_numbers = #tpu.dot_dimension_numbers<[1], [0], [0], [1], [0, 0, 1, 1], [], []>} : vector<8x128xf32>, vector<128x256xf32>, vector<8x256xf32> -> vector<8x256xf32>
    %96 = arith.addf %94, %95 : vector<8x256xf32>
    %97 = arith.negf %96 : vector<8x256xf32>
    %98 = math.exp %97 : vector<8x256xf32>
    %cst_40 = arith.constant 1.000000e+00 : f32
    %99 = vector.broadcast %cst_40 : f32 to vector<8x256xf32>
    %100 = arith.addf %99, %98 : vector<8x256xf32>
    %101 = arith.divf %99, %100 : vector<8x256xf32>
    %102 = vector.extract_strided_slice %101 {offsets = [0, 0], sizes = [8, 128], strides = [1, 1]} : vector<8x256xf32> to vector<8x128xf32>
    %103 = vector.extract_strided_slice %101 {offsets = [0, 128], sizes = [8, 128], strides = [1, 1]} : vector<8x256xf32> to vector<8x128xf32>
    %104 = vector.extract_strided_slice %93 {offsets = [0, 256], sizes = [8, 128], strides = [1, 1]} : vector<8x384xf32> to vector<8x128xf32>
    %105 = arith.mulf %102, %87 : vector<8x128xf32>
    %cst_41 = arith.constant dense<0.000000e+00> : vector<8x128xf32>
    %106 = tpu.matmul %105, %15, %cst_41 {dimension_numbers = #tpu.dot_dimension_numbers<[1], [0], [0], [1], [0, 0, 1, 1], [], []>} : vector<8x128xf32>, vector<128x128xf32>, vector<8x128xf32> -> vector<8x128xf32>
    %107 = arith.addf %104, %106 : vector<8x128xf32>
    %108 = math.tanh %107 : vector<8x128xf32>
    %109 = arith.subf %87, %108 : vector<8x128xf32>
    %110 = arith.mulf %103, %109 : vector<8x128xf32>
    %111 = arith.addf %108, %110 : vector<8x128xf32>
    %112 = arith.index_cast %91 : i32 to index
    %c0_42 = arith.constant 0 : index
    %113 = vector.load %arg7[%112, %c0_42] : memref<64x128xf32, #tpu.memory_space<vmem>>, vector<8x128xf32>
    tpu.vector_store %arg7[%112, %c0_42], %111 {strides = array<i32>} : memref<64x128xf32, #tpu.memory_space<vmem>>, vector<8x128xf32>,
    %c4_i32 = arith.constant 4 : i32
    %c8_i32_43 = arith.constant 8 : i32
    %114 = arith.muli %c4_i32, %c8_i32_43 : i32
    %115 = tpu.assume_multiple %114, 8 : i32
    %116 = arith.index_cast %115 : i32 to index
    %c0_44 = arith.constant 0 : index
    %117 = vector.load %arg9[%116, %c0_44] : memref<64x384xf32, #tpu.memory_space<vmem>>, vector<8x384xf32>
    %118 = vector.extract_strided_slice %117 {offsets = [0, 0], sizes = [8, 256], strides = [1, 1]} : vector<8x384xf32> to vector<8x256xf32>
    %cst_45 = arith.constant dense<0.000000e+00> : vector<8x256xf32>
    %119 = tpu.matmul %111, %13, %cst_45 {dimension_numbers = #tpu.dot_dimension_numbers<[1], [0], [0], [1], [0, 0, 1, 1], [], []>} : vector<8x128xf32>, vector<128x256xf32>, vector<8x256xf32> -> vector<8x256xf32>
    %120 = arith.addf %118, %119 : vector<8x256xf32>
    %121 = arith.negf %120 : vector<8x256xf32>
    %122 = math.exp %121 : vector<8x256xf32>
    %cst_46 = arith.constant 1.000000e+00 : f32
    %123 = vector.broadcast %cst_46 : f32 to vector<8x256xf32>
    %124 = arith.addf %123, %122 : vector<8x256xf32>
    %125 = arith.divf %123, %124 : vector<8x256xf32>
    %126 = vector.extract_strided_slice %125 {offsets = [0, 0], sizes = [8, 128], strides = [1, 1]} : vector<8x256xf32> to vector<8x128xf32>
    %127 = vector.extract_strided_slice %125 {offsets = [0, 128], sizes = [8, 128], strides = [1, 1]} : vector<8x256xf32> to vector<8x128xf32>
    %128 = vector.extract_strided_slice %117 {offsets = [0, 256], sizes = [8, 128], strides = [1, 1]} : vector<8x384xf32> to vector<8x128xf32>
    %129 = arith.mulf %126, %111 : vector<8x128xf32>
    %cst_47 = arith.constant dense<0.000000e+00> : vector<8x128xf32>
    %130 = tpu.matmul %129, %15, %cst_47 {dimension_numbers = #tpu.dot_dimension_numbers<[1], [0], [0], [1], [0, 0, 1, 1], [], []>} : vector<8x128xf32>, vector<128x128xf32>, vector<8x128xf32> -> vector<8x128xf32>
    %131 = arith.addf %128, %130 : vector<8x128xf32>
    %132 = math.tanh %131 : vector<8x128xf32>
    %133 = arith.subf %111, %132 : vector<8x128xf32>
    %134 = arith.mulf %127, %133 : vector<8x128xf32>
    %135 = arith.addf %132, %134 : vector<8x128xf32>
    %136 = arith.index_cast %115 : i32 to index
    %c0_48 = arith.constant 0 : index
    %137 = vector.load %arg7[%136, %c0_48] : memref<64x128xf32, #tpu.memory_space<vmem>>, vector<8x128xf32>
    tpu.vector_store %arg7[%136, %c0_48], %135 {strides = array<i32>} : memref<64x128xf32, #tpu.memory_space<vmem>>, vector<8x128xf32>,
    %c5_i32 = arith.constant 5 : i32
    %c8_i32_49 = arith.constant 8 : i32
    %138 = arith.muli %c5_i32, %c8_i32_49 : i32
    %139 = tpu.assume_multiple %138, 8 : i32
    %140 = arith.index_cast %139 : i32 to index
    %c0_50 = arith.constant 0 : index
    %141 = vector.load %arg9[%140, %c0_50] : memref<64x384xf32, #tpu.memory_space<vmem>>, vector<8x384xf32>
    %142 = vector.extract_strided_slice %141 {offsets = [0, 0], sizes = [8, 256], strides = [1, 1]} : vector<8x384xf32> to vector<8x256xf32>
    %cst_51 = arith.constant dense<0.000000e+00> : vector<8x256xf32>
    %143 = tpu.matmul %135, %13, %cst_51 {dimension_numbers = #tpu.dot_dimension_numbers<[1], [0], [0], [1], [0, 0, 1, 1], [], []>} : vector<8x128xf32>, vector<128x256xf32>, vector<8x256xf32> -> vector<8x256xf32>
    %144 = arith.addf %142, %143 : vector<8x256xf32>
    %145 = arith.negf %144 : vector<8x256xf32>
    %146 = math.exp %145 : vector<8x256xf32>
    %cst_52 = arith.constant 1.000000e+00 : f32
    %147 = vector.broadcast %cst_52 : f32 to vector<8x256xf32>
    %148 = arith.addf %147, %146 : vector<8x256xf32>
    %149 = arith.divf %147, %148 : vector<8x256xf32>
    %150 = vector.extract_strided_slice %149 {offsets = [0, 0], sizes = [8, 128], strides = [1, 1]} : vector<8x256xf32> to vector<8x128xf32>
    %151 = vector.extract_strided_slice %149 {offsets = [0, 128], sizes = [8, 128], strides = [1, 1]} : vector<8x256xf32> to vector<8x128xf32>
    %152 = vector.extract_strided_slice %141 {offsets = [0, 256], sizes = [8, 128], strides = [1, 1]} : vector<8x384xf32> to vector<8x128xf32>
    %153 = arith.mulf %150, %135 : vector<8x128xf32>
    %cst_53 = arith.constant dense<0.000000e+00> : vector<8x128xf32>
    %154 = tpu.matmul %153, %15, %cst_53 {dimension_numbers = #tpu.dot_dimension_numbers<[1], [0], [0], [1], [0, 0, 1, 1], [], []>} : vector<8x128xf32>, vector<128x128xf32>, vector<8x128xf32> -> vector<8x128xf32>
    %155 = arith.addf %152, %154 : vector<8x128xf32>
    %156 = math.tanh %155 : vector<8x128xf32>
    %157 = arith.subf %135, %156 : vector<8x128xf32>
    %158 = arith.mulf %151, %157 : vector<8x128xf32>
    %159 = arith.addf %156, %158 : vector<8x128xf32>
    %160 = arith.index_cast %139 : i32 to index
    %c0_54 = arith.constant 0 : index
    %161 = vector.load %arg7[%160, %c0_54] : memref<64x128xf32, #tpu.memory_space<vmem>>, vector<8x128xf32>
    tpu.vector_store %arg7[%160, %c0_54], %159 {strides = array<i32>} : memref<64x128xf32, #tpu.memory_space<vmem>>, vector<8x128xf32>,
    %c6_i32 = arith.constant 6 : i32
    %c8_i32_55 = arith.constant 8 : i32
    %162 = arith.muli %c6_i32, %c8_i32_55 : i32
    %163 = tpu.assume_multiple %162, 8 : i32
    %164 = arith.index_cast %163 : i32 to index
    %c0_56 = arith.constant 0 : index
    %165 = vector.load %arg9[%164, %c0_56] : memref<64x384xf32, #tpu.memory_space<vmem>>, vector<8x384xf32>
    %166 = vector.extract_strided_slice %165 {offsets = [0, 0], sizes = [8, 256], strides = [1, 1]} : vector<8x384xf32> to vector<8x256xf32>
    %cst_57 = arith.constant dense<0.000000e+00> : vector<8x256xf32>
    %167 = tpu.matmul %159, %13, %cst_57 {dimension_numbers = #tpu.dot_dimension_numbers<[1], [0], [0], [1], [0, 0, 1, 1], [], []>} : vector<8x128xf32>, vector<128x256xf32>, vector<8x256xf32> -> vector<8x256xf32>
    %168 = arith.addf %166, %167 : vector<8x256xf32>
    %169 = arith.negf %168 : vector<8x256xf32>
    %170 = math.exp %169 : vector<8x256xf32>
    %cst_58 = arith.constant 1.000000e+00 : f32
    %171 = vector.broadcast %cst_58 : f32 to vector<8x256xf32>
    %172 = arith.addf %171, %170 : vector<8x256xf32>
    %173 = arith.divf %171, %172 : vector<8x256xf32>
    %174 = vector.extract_strided_slice %173 {offsets = [0, 0], sizes = [8, 128], strides = [1, 1]} : vector<8x256xf32> to vector<8x128xf32>
    %175 = vector.extract_strided_slice %173 {offsets = [0, 128], sizes = [8, 128], strides = [1, 1]} : vector<8x256xf32> to vector<8x128xf32>
    %176 = vector.extract_strided_slice %165 {offsets = [0, 256], sizes = [8, 128], strides = [1, 1]} : vector<8x384xf32> to vector<8x128xf32>
    %177 = arith.mulf %174, %159 : vector<8x128xf32>
    %cst_59 = arith.constant dense<0.000000e+00> : vector<8x128xf32>
    %178 = tpu.matmul %177, %15, %cst_59 {dimension_numbers = #tpu.dot_dimension_numbers<[1], [0], [0], [1], [0, 0, 1, 1], [], []>} : vector<8x128xf32>, vector<128x128xf32>, vector<8x128xf32> -> vector<8x128xf32>
    %179 = arith.addf %176, %178 : vector<8x128xf32>
    %180 = math.tanh %179 : vector<8x128xf32>
    %181 = arith.subf %159, %180 : vector<8x128xf32>
    %182 = arith.mulf %175, %181 : vector<8x128xf32>
    %183 = arith.addf %180, %182 : vector<8x128xf32>
    %184 = arith.index_cast %163 : i32 to index
    %c0_60 = arith.constant 0 : index
    %185 = vector.load %arg7[%184, %c0_60] : memref<64x128xf32, #tpu.memory_space<vmem>>, vector<8x128xf32>
    tpu.vector_store %arg7[%184, %c0_60], %183 {strides = array<i32>} : memref<64x128xf32, #tpu.memory_space<vmem>>, vector<8x128xf32>,
    %c7_i32 = arith.constant 7 : i32
    %c8_i32_61 = arith.constant 8 : i32
    %186 = arith.muli %c7_i32, %c8_i32_61 : i32
    %187 = tpu.assume_multiple %186, 8 : i32
    %188 = arith.index_cast %187 : i32 to index
    %c0_62 = arith.constant 0 : index
    %189 = vector.load %arg9[%188, %c0_62] : memref<64x384xf32, #tpu.memory_space<vmem>>, vector<8x384xf32>
    %190 = vector.extract_strided_slice %189 {offsets = [0, 0], sizes = [8, 256], strides = [1, 1]} : vector<8x384xf32> to vector<8x256xf32>
    %cst_63 = arith.constant dense<0.000000e+00> : vector<8x256xf32>
    %191 = tpu.matmul %183, %13, %cst_63 {dimension_numbers = #tpu.dot_dimension_numbers<[1], [0], [0], [1], [0, 0, 1, 1], [], []>} : vector<8x128xf32>, vector<128x256xf32>, vector<8x256xf32> -> vector<8x256xf32>
    %192 = arith.addf %190, %191 : vector<8x256xf32>
    %193 = arith.negf %192 : vector<8x256xf32>
    %194 = math.exp %193 : vector<8x256xf32>
    %cst_64 = arith.constant 1.000000e+00 : f32
    %195 = vector.broadcast %cst_64 : f32 to vector<8x256xf32>
    %196 = arith.addf %195, %194 : vector<8x256xf32>
    %197 = arith.divf %195, %196 : vector<8x256xf32>
    %198 = vector.extract_strided_slice %197 {offsets = [0, 0], sizes = [8, 128], strides = [1, 1]} : vector<8x256xf32> to vector<8x128xf32>
    %199 = vector.extract_strided_slice %197 {offsets = [0, 128], sizes = [8, 128], strides = [1, 1]} : vector<8x256xf32> to vector<8x128xf32>
    %200 = vector.extract_strided_slice %189 {offsets = [0, 256], sizes = [8, 128], strides = [1, 1]} : vector<8x384xf32> to vector<8x128xf32>
    %201 = arith.mulf %198, %183 : vector<8x128xf32>
    %cst_65 = arith.constant dense<0.000000e+00> : vector<8x128xf32>
    %202 = tpu.matmul %201, %15, %cst_65 {dimension_numbers = #tpu.dot_dimension_numbers<[1], [0], [0], [1], [0, 0, 1, 1], [], []>} : vector<8x128xf32>, vector<128x128xf32>, vector<8x128xf32> -> vector<8x128xf32>
    %203 = arith.addf %200, %202 : vector<8x128xf32>
    %204 = math.tanh %203 : vector<8x128xf32>
    %205 = arith.subf %183, %204 : vector<8x128xf32>
    %206 = arith.mulf %199, %205 : vector<8x128xf32>
    %207 = arith.addf %204, %206 : vector<8x128xf32>
    %208 = arith.index_cast %187 : i32 to index
    %c0_66 = arith.constant 0 : index
    %209 = vector.load %arg7[%208, %c0_66] : memref<64x128xf32, #tpu.memory_space<vmem>>, vector<8x128xf32>
    tpu.vector_store %arg7[%208, %c0_66], %207 {strides = array<i32>} : memref<64x128xf32, #tpu.memory_space<vmem>>, vector<8x128xf32>,
    %c8_i32_67 = arith.constant 8 : i32
    %c0_68 = arith.constant 0 : index
    %c0_69 = arith.constant 0 : index
    %c0_70 = arith.constant 0 : index
    %210 = vector.load %arg8[%c0_68, %c0_69, %c0_70] : memref<1x8x128xf32, #tpu.memory_space<vmem>>, vector<1x8x128xf32>
    %211 = vector.shape_cast %210 : vector<1x8x128xf32> to vector<8x128xf32>
    %212 = vector.shape_cast %207 : vector<8x128xf32> to vector<1x8x128xf32>
    tpu.vector_store %arg8[%c0_68, %c0_69, %c0_70], %212 {strides = array<i32>} : memref<1x8x128xf32, #tpu.memory_space<vmem>>, vector<1x8x128xf32>,
    return
  }
  func.func @transform_0(%arg0: i32) -> (i32, i32) {
    %c0_i32 = arith.constant 0 : i32
    %c0_i32_0 = arith.constant 0 : i32
    %c0_i32_1 = arith.constant 0 : i32
    return %c0_i32, %c0_i32_0 : i32, i32
  }
  func.func @transform_1(%arg0: i32) -> (i32, i32, i32) {
    %c0_i32 = arith.constant 0 : i32
    %c0_i32_0 = arith.constant 0 : i32
    %c0_i32_1 = arith.constant 0 : i32
    return %arg0, %c0_i32, %c0_i32_0 : i32, i32, i32
  }
  func.func @transform_2(%arg0: i32) -> (i32, i32, i32) {
    %c0_i32 = arith.constant 0 : i32
    %c0_i32_0 = arith.constant 0 : i32
    %c0_i32_1 = arith.constant 0 : i32
    return %arg0, %c0_i32, %c0_i32_0 : i32, i32, i32
  }
  func.func @transform_3(%arg0: i32) -> (i32, i32, i32) {
    %c0_i32 = arith.constant 0 : i32
    %c0_i32_0 = arith.constant 0 : i32
    %c0_i32_1 = arith.constant 0 : i32
    return %arg0, %c0_i32, %c0_i32_0 : i32, i32, i32
  }
  func.func @transform_4(%arg0: i32) -> (i32, i32, i32) {
    %c0_i32 = arith.constant 0 : i32
    %c0_i32_0 = arith.constant 0 : i32
    %c0_i32_1 = arith.constant 0 : i32
    return %arg0, %c0_i32, %c0_i32_0 : i32, i32, i32
  }
  func.func @transform_5(%arg0: i32) -> (i32, i32, i32) {
    %c0_i32 = arith.constant 0 : i32
    %c0_i32_0 = arith.constant 0 : i32
    %c0_i32_1 = arith.constant 0 : i32
    return %arg0, %c0_i32, %c0_i32_0 : i32, i32, i32
  }
  func.func @transform_6(%arg0: i32) -> (i32, i32) {
    %c0_i32 = arith.constant 0 : i32
    %c0_i32_0 = arith.constant 0 : i32
    %c0_i32_1 = arith.constant 0 : i32
    return %c0_i32, %c0_i32_0 : i32, i32
  }
  func.func @transform_7(%arg0: i32) -> (i32, i32, i32) {
    %c0_i32 = arith.constant 0 : i32
    %c0_i32_0 = arith.constant 0 : i32
    %c0_i32_1 = arith.constant 0 : i32
    return %arg0, %c0_i32, %c0_i32_0 : i32, i32, i32
  }
}

</mosaic_0001>

<llo_original>
// kernel: encoder_forward.1
$region0: #{encoder_forward.1}
  #allocation0 [shape = 'u32[]', space=smem, size = 0x4, offset = 0x4, fixed_abs, tag = 'smem constant byte address 0x4 - core index']
  #allocation1 [shape = 'u32[144,128]{1,0:T(1,128)}', space=vmem, size = 0x12000, scoped, tag = 'internal scratch']
  #allocation2 [shape = 'f32[64,384]{1,0:T(8,128)}', space=vmem, size = 0x18000, scoped, tag = 'scratch operand']
  %s0 = inlined_call_operand.vmem [shape: f32[64,128], index: 0, kind: input, shape index: {}]
  %s1 = inlined_call_operand.vmem [shape: f32[2,8,128], index: 1, kind: input, shape index: {}]
  %s2 = inlined_call_operand.hbm [shape: f32[2,128,384], index: 2, kind: input, shape index: {}]
  %s3 = inlined_call_operand.hbm [shape: f32[2,128,256], index: 3, kind: input, shape index: {}]
  %s4 = inlined_call_operand.vmem [shape: f32[2,128,128], index: 4, kind: input, shape index: {}]
  %s5 = inlined_call_operand.vmem [shape: f32[2,1,384], index: 5, kind: input, shape index: {}]
  %s6 = inlined_call_operand.vmem [shape: f32[64,128], index: 6, kind: output, shape index: {0}]
  %s7 = inlined_call_operand.vmem [shape: f32[2,8,128], index: 7, kind: output, shape index: {1}]
  %8 = xla_tuple %s6, %s7
  %s9 = sld [smem:[#allocation0]]
  $region77: #{encoder_forward.1} parent=0
    _
  %s11 = ssub.s32 1, %s9
  %s12 = scalar_select 0, %s11, %s9
  $region1: #{encoder_forward.1} parent=0
    #allocation3 [shape = 'u8[393216]{0}', space=vmem, size = 0x60000, scoped, tag = 'input window, operand 2']
    #allocation4 [shape = 's32[2]{0}', space=sflag, size = 0x8, scoped, tag = 'scoped memory for encoder_forward.1']
    #allocation5 [shape = 'u8[262144]{0}', space=vmem, size = 0x40000, scoped, tag = 'input window, operand 3']
    #allocation6 [shape = 's32[2]{0}', space=sflag, size = 0x8, scoped, tag = 'scoped memory for encoder_forward.1']
    %13 = vsyncpa [#allocation4], 0
    %s14 = scalar_lea.sflag [#allocation4], 1
    %15 = vsyncpa %s14, 0
    %16 = vsyncpa [#allocation6], 0
    %s17 = scalar_lea.sflag [#allocation6], 1
    %18 = vsyncpa %s17, 0
    loop: start=0, step=1, limit=4
    $region2: #{encoder_forward.1} parent=1 // loop_pre_header
      _
    $region3: #{encoder_forward.1} parent=1 // loop_header
      %s20 = sphi 0, %s24
      %p21 = scmp.ge.s32.totalorder %s20, 4
      %s28 = sphi 0, %s28
      %s30 = sphi 0, %s28
      %s31 = sphi 0, %s30
      %s45 = sphi 0, %s31
      %s51 = sphi 0, %s53
      %s54 = sphi 0, %s51
      %s55 = sphi 0, %s54
      %s71 = sphi 0, %s55
      %s77 = sphi 0, %s79
      %s80 = sphi 0, %s77
      %s81 = sphi 0, %s80
      %s97 = sphi 0, %s81
      %s103 = sphi 0, %s105
      %s106 = sphi 0, %s103
      %s107 = sphi 0, %s106
      %s123 = sphi 0, %s107
      %s129 = sphi 0, %s131
      %s132 = sphi 0, %s129
      %s133 = sphi 0, %s132
      %s149 = sphi 0, %s133
      %s155 = sphi 0, %s157
      %s158 = sphi 0, %s155
      %s159 = sphi 0, %s158
      %s175 = sphi 0, %s159
      %s179 = sphi 0, %s179
      %s181 = sphi 0, %s179
      %s182 = sphi 0, %s181
      %s196 = sphi 0, %s182
      %s202 = sphi 0, %s204
      %s205 = sphi 0, %s202
      %s206 = sphi 0, %s205
      %s222 = sphi 0, %s206
    $region4: #{encoder_forward.1} parent=1 // loop_header_branch
      %23 = sbr.rel (%p21) target = $region8
    $region5: #{encoder_forward.1} parent=1 // loop_body
      %s25 = ssub.s32 %s20, 1
      %s26 = ssub.s32 %s20, 2
      %s27 = sadd.s32 %s20, 1
      %s29 = sadd.s32 %s28, 1
      %p32 = scmp.eq.s32.totalorder %s20, 1
      %p33 = scmp.ne.s32.totalorder %s28, %s30
      %p34 = scmp.eq.s32.totalorder %s20, 0
      %p35 = por %p33, %p34
      %p36 = scmp.ne.s32.totalorder %s28, %s30
      %p37 = scmp.eq.s32.totalorder %s25, 1
      %p38 = por %p36, %p37
      %p39 = scmp.ne.s32.totalorder %s30, %s31
      %p40 = scmp.eq.s32.totalorder %s25, 0
      %p41 = por %p39, %p40
      %p42 = scmp.ne.s32.totalorder %s30, %s31
      %p43 = scmp.eq.s32.totalorder %s26, 1
      %p44 = por %p42, %p43
      %p46 = scmp.ne.s32.totalorder %s31, %s45
      %p47 = scmp.eq.s32.totalorder %s26, 0
      %p48 = por %p46, %p47
      %s49 = ssub.s32 %s20, %s27
      %p50 = scmp.eq.s32.totalorder %s49, 0
      %s52 = sadd.s32 %s51, 1
      %s53 = scalar_select %p50, %s51, %s52
      %p56 = pneg %p50
      %p57 = scmp.eq.s32.totalorder %s20, 1
      %p58 = por %p56, %p57
      %p59 = scmp.ne.s32.totalorder %s51, %s54
      %p60 = scmp.eq.s32.totalorder %s20, 0
      %p61 = por %p59, %p60
      %p62 = scmp.ne.s32.totalorder %s51, %s54
      %p63 = scmp.eq.s32.totalorder %s25, 1
      %p64 = por %p62, %p63
      %p65 = scmp.ne.s32.totalorder %s54, %s55
      %p66 = scmp.eq.s32.totalorder %s25, 0
      %p67 = por %p65, %p66
      %p68 = scmp.ne.s32.totalorder %s54, %s55
      %p69 = scmp.eq.s32.totalorder %s26, 1
      %p70 = por %p68, %p69
      %p72 = scmp.ne.s32.totalorder %s55, %s71
      %p73 = scmp.eq.s32.totalorder %s26, 0
      %p74 = por %p72, %p73
      %s75 = ssub.s32 %s20, %s27
      %p76 = scmp.eq.s32.totalorder %s75, 0
      %s78 = sadd.s32 %s77, 1
      %s79 = scalar_select %p76, %s77, %s78
      %p82 = pneg %p76
      %p83 = scmp.eq.s32.totalorder %s20, 1
      %p84 = por %p82, %p83
      %p85 = scmp.ne.s32.totalorder %s77, %s80
      %p86 = scmp.eq.s32.totalorder %s20, 0
      %p87 = por %p85, %p86
      %p88 = scmp.ne.s32.totalorder %s77, %s80
      %p89 = scmp.eq.s32.totalorder %s25, 1
      %p90 = por %p88, %p89
      %p91 = scmp.ne.s32.totalorder %s80, %s81
      %p92 = scmp.eq.s32.totalorder %s25, 0
      %p93 = por %p91, %p92
      %p94 = scmp.ne.s32.totalorder %s80, %s81
      %p95 = scmp.eq.s32.totalorder %s26, 1
      %p96 = por %p94, %p95
      %p98 = scmp.ne.s32.totalorder %s81, %s97
      %p99 = scmp.eq.s32.totalorder %s26, 0
      %p100 = por %p98, %p99
      %s101 = ssub.s32 %s20, %s27
      %p102 = scmp.eq.s32.totalorder %s101, 0
      %s104 = sadd.s32 %s103, 1
      %s105 = scalar_select %p102, %s103, %s104
      %p108 = pneg %p102
      %p109 = scmp.eq.s32.totalorder %s20, 1
      %p110 = por %p108, %p109
      %p111 = scmp.ne.s32.totalorder %s103, %s106
      %p112 = scmp.eq.s32.totalorder %s20, 0
      %p113 = por %p111, %p112
      %p114 = scmp.ne.s32.totalorder %s103, %s106
      %p115 = scmp.eq.s32.totalorder %s25, 1
      %p116 = por %p114, %p115
      %p117 = scmp.ne.s32.totalorder %s106, %s107
      %p118 = scmp.eq.s32.totalorder %s25, 0
      %p119 = por %p117, %p118
      %p120 = scmp.ne.s32.totalorder %s106, %s107
      %p121 = scmp.eq.s32.totalorder %s26, 1
      %p122 = por %p120, %p121
      %p124 = scmp.ne.s32.totalorder %s107, %s123
      %p125 = scmp.eq.s32.totalorder %s26, 0
      %p126 = por %p124, %p125
      %s127 = ssub.s32 %s20, %s27
      %p128 = scmp.eq.s32.totalorder %s127, 0
      %s130 = sadd.s32 %s129, 1
      %s131 = scalar_select %p128, %s129, %s130
      %p134 = pneg %p128
      %p135 = scmp.eq.s32.totalorder %s20, 1
      %p136 = por %p134, %p135
      %p137 = scmp.ne.s32.totalorder %s129, %s132
      %p138 = scmp.eq.s32.totalorder %s20, 0
      %p139 = por %p137, %p138
      %p140 = scmp.ne.s32.totalorder %s129, %s132
      %p141 = scmp.eq.s32.totalorder %s25, 1
      %p142 = por %p140, %p141
      %p143 = scmp.ne.s32.totalorder %s132, %s133
      %p144 = scmp.eq.s32.totalorder %s25, 0
      %p145 = por %p143, %p144
      %p146 = scmp.ne.s32.totalorder %s132, %s133
      %p147 = scmp.eq.s32.totalorder %s26, 1
      %p148 = por %p146, %p147
      %p150 = scmp.ne.s32.totalorder %s133, %s149
      %p151 = scmp.eq.s32.totalorder %s26, 0
      %p152 = por %p150, %p151
      %s153 = ssub.s32 %s20, %s27
      %p154 = scmp.eq.s32.totalorder %s153, 0
      %s156 = sadd.s32 %s155, 1
      %s157 = scalar_select %p154, %s155, %s156
      %p160 = pneg %p154
      %p161 = scmp.eq.s32.totalorder %s20, 1
      %p162 = por %p160, %p161
      %p163 = scmp.ne.s32.totalorder %s155, %s158
      %p164 = scmp.eq.s32.totalorder %s20, 0
      %p165 = por %p163, %p164
      %p166 = scmp.ne.s32.totalorder %s155, %s158
      %p167 = scmp.eq.s32.totalorder %s25, 1
      %p168 = por %p166, %p167
      %p169 = scmp.ne.s32.totalorder %s158, %s159
      %p170 = scmp.eq.s32.totalorder %s25, 0
      %p171 = por %p169, %p170
      %p172 = scmp.ne.s32.totalorder %s158, %s159
      %p173 = scmp.eq.s32.totalorder %s26, 1
      %p174 = por %p172, %p173
      %p176 = scmp.ne.s32.totalorder %s159, %s175
      %p177 = scmp.eq.s32.totalorder %s26, 0
      %p178 = por %p176, %p177
      %s180 = sadd.s32 %s179, 1
      %p183 = scmp.eq.s32.totalorder %s20, 1
      %p184 = scmp.ne.s32.totalorder %s179, %s181
      %p185 = scmp.eq.s32.totalorder %s20, 0
      %p186 = por %p184, %p185
      %p187 = scmp.ne.s32.totalorder %s179, %s181
      %p188 = scmp.eq.s32.totalorder %s25, 1
      %p189 = por %p187, %p188
      %p190 = scmp.ne.s32.totalorder %s181, %s182
      %p191 = scmp.eq.s32.totalorder %s25, 0
      %p192 = por %p190, %p191
      %p193 = scmp.ne.s32.totalorder %s181, %s182
      %p194 = scmp.eq.s32.totalorder %s26, 1
      %p195 = por %p193, %p194
      %p197 = scmp.ne.s32.totalorder %s182, %s196
      %p198 = scmp.eq.s32.totalorder %s26, 0
      %p199 = por %p197, %p198
      %s200 = ssub.s32 %s20, %s27
      %p201 = scmp.eq.s32.totalorder %s200, 0
      %s203 = sadd.s32 %s202, 1
      %s204 = scalar_select %p201, %s202, %s203
      %p207 = pneg %p201
      %p208 = scmp.eq.s32.totalorder %s20, 1
      %p209 = por %p207, %p208
      %p210 = scmp.ne.s32.totalorder %s202, %s205
      %p211 = scmp.eq.s32.totalorder %s20, 0
      %p212 = por %p210, %p211
      %p213 = scmp.ne.s32.totalorder %s202, %s205
      %p214 = scmp.eq.s32.totalorder %s25, 1
      %p215 = por %p213, %p214
      %p216 = scmp.ne.s32.totalorder %s205, %s206
      %p217 = scmp.eq.s32.totalorder %s25, 0
      %p218 = por %p216, %p217
      %p219 = scmp.ne.s32.totalorder %s205, %s206
      %p220 = scmp.eq.s32.totalorder %s26, 1
      %p221 = por %p219, %p220
      %p223 = scmp.ne.s32.totalorder %s206, %s222
      %p224 = scmp.eq.s32.totalorder %s26, 0
      %p225 = por %p223, %p224
      %p226 = scmp.le.s32.totalorder 1, %s20
      %p227 = scmp.lt.s32.totalorder %s20, 3
      %p228 = pnand %p226, %p227
      %p229 = pneg %p228
      // Predicated region
      $region9: #{encoder_forward.1} parent=5 // pred_check
        _
      $region10: #{encoder_forward.1} parent=5 // pred_check_branch
        %231 = sbr.rel (%p228) target = $region12
      $region11: #{encoder_forward.1} parent=5 // pred_region
        %s232 = ssub.s32 %s20, 1
        // Predicated region
        $region13: #{encoder_forward.1} parent=11 // pred_check
          %p233 = pneg %p41
        $region14: #{encoder_forward.1} parent=11 // pred_check_branch
          %235 = sbr.rel (%p233) target = $region16
        $region15: #{encoder_forward.1} parent=11 // pred_region
          _
        $region16: #{encoder_forward.1} parent=11 // pred_fallthru
          _
      $region12: #{encoder_forward.1} parent=5 // pred_fallthru
        _
      %p236 = scmp.lt.s32.totalorder %s20, 2
      // Predicated region
      $region17: #{encoder_forward.1} parent=5 // pred_check
        %p237 = pneg %p236
      $region18: #{encoder_forward.1} parent=5 // pred_check_branch
        %239 = sbr.rel (%p237) target = $region20
      $region19: #{encoder_forward.1} parent=5 // pred_region
        // Predicated region
        $region21: #{encoder_forward.1} parent=19 // pred_check
          %p240 = pneg %p61
        $region22: #{encoder_forward.1} parent=19 // pred_check_branch
          %242 = sbr.rel (%p240) target = $region24
        $region23: #{encoder_forward.1} parent=19 // pred_region
          %p243 = scmp.lt.s32.totalorder %s20, 1
          %s244 = scalar_select %p243, %s20, 1
          %s245 = smul.addr %s244, 8
          %s246 = scalar_lea.vmem %s1, %s245
        $region24: #{encoder_forward.1} parent=19 // pred_fallthru
          _
        // Predicated region
        $region25: #{encoder_forward.1} parent=19 // pred_check
          %p247 = pneg %p87
        $region26: #{encoder_forward.1} parent=19 // pred_check_branch
          %249 = sbr.rel (%p247) target = $region28
        $region27: #{encoder_forward.1} parent=19 // pred_region
          %s250 = sand.u32 %s77, 1
          %s251 = scalar_lea.sflag [#allocation4], %s250
          %s252 = sand.u32 %s77, 1
          %s253 = smul.addr %s252, 384
          %s254 = scalar_lea.vmem [#allocation3], %s253
          %s256 = ssub.s32 6144, 6144
          %257 = vsyncadd %s251, %s256
          %s258 = smul.addr %s20, 48
          %s259 = smul.addr %s258, 128
          %s260 = scalar_lea.hbm %s2, %s259
          %s261 = sshll.u32 %s254, 4
          %s262 = int_to_ptr.vmem [resolvable:$true] %s261
          %267 = dma.hbm_to_vmem [thread:$0]  %s260, 6144, %s262, %s251, 384, 384, 24
        $region28: #{encoder_forward.1} parent=19 // pred_fallthru
          _
        // Predicated region
        $region29: #{encoder_forward.1} parent=19 // pred_check
          %p268 = pneg %p113
        $region30: #{encoder_forward.1} parent=19 // pred_check_branch
          %270 = sbr.rel (%p268) target = $region32
        $region31: #{encoder_forward.1} parent=19 // pred_region
          %s271 = sand.u32 %s103, 1
          %s272 = scalar_lea.sflag [#allocation6], %s271
          %s273 = sand.u32 %s103, 1
          %s274 = smul.addr %s273, 256
          %s275 = scalar_lea.vmem [#allocation5], %s274
          %s277 = ssub.s32 4096, 4096
          %278 = vsyncadd %s272, %s277
          %s279 = smul.addr %s20, 32
          %s280 = smul.addr %s279, 128
          %s281 = scalar_lea.hbm %s3, %s280
          %s282 = sshll.u32 %s275, 4
          %s283 = int_to_ptr.vmem [resolvable:$true] %s282
          %288 = dma.hbm_to_vmem [thread:$0]  %s281, 4096, %s283, %s272, 256, 256, 16
        $region32: #{encoder_forward.1} parent=19 // pred_fallthru
          _
        // Predicated region
        $region33: #{encoder_forward.1} parent=19 // pred_check
          %p289 = pneg %p139
        $region34: #{encoder_forward.1} parent=19 // pred_check_branch
          %291 = sbr.rel (%p289) target = $region36
        $region35: #{encoder_forward.1} parent=19 // pred_region
          %p292 = scmp.lt.s32.totalorder %s20, 1
          %s293 = scalar_select %p292, %s20, 1
          %s294 = smul.addr %s293, 16
          %s295 = smul.addr %s294, 8
          %s296 = scalar_lea.vmem %s4, %s295
        $region36: #{encoder_forward.1} parent=19 // pred_fallthru
          _
        // Predicated region
        $region37: #{encoder_forward.1} parent=19 // pred_check
          %p297 = pneg %p165
        $region38: #{encoder_forward.1} parent=19 // pred_check_branch
          %299 = sbr.rel (%p297) target = $region40
        $region39: #{encoder_forward.1} parent=19 // pred_region
          %p300 = scmp.lt.s32.totalorder %s20, 1
          %s301 = scalar_select %p300, %s20, 1
          %s302 = smul.addr %s301, 3
          %s303 = scalar_lea.vmem %s5, %s302
        $region40: #{encoder_forward.1} parent=19 // pred_fallthru
          _
      $region20: #{encoder_forward.1} parent=5 // pred_fallthru
        _
      %p304 = scmp.le.s32.totalorder 1, %s20
      %p305 = scmp.lt.s32.totalorder %s20, 3
      %p306 = pnand %p304, %p305
      %p307 = pneg %p306
      // Predicated region
      $region41: #{encoder_forward.1} parent=5 // pred_check
        _
      $region42: #{encoder_forward.1} parent=5 // pred_check_branch
        %309 = sbr.rel (%p306) target = $region44
      $region43: #{encoder_forward.1} parent=5 // pred_region
        %s310 = ssub.s32 %s20, 1
        %s311 = sand.u32 %s80, 1
        %s312 = scalar_lea.sflag [#allocation4], %s311
        %s313 = sand.u32 %s80, 1
        %s314 = smul.addr %s313, 384
        %s315 = scalar_lea.vmem [#allocation3], %s314
        // Predicated region
        $region45: #{encoder_forward.1} parent=43 // pred_check
          %p316 = pneg %p93
        $region46: #{encoder_forward.1} parent=43 // pred_check_branch
          %318 = sbr.rel (%p316) target = $region48
        $region47: #{encoder_forward.1} parent=43 // pred_region
          %319 = dma.done %s312, 6144
        $region48: #{encoder_forward.1} parent=43 // pred_fallthru
          _
        %s320 = sand.u32 %s106, 1
        %s321 = scalar_lea.sflag [#allocation6], %s320
        %s322 = sand.u32 %s106, 1
        %s323 = smul.addr %s322, 256
        %s324 = scalar_lea.vmem [#allocation5], %s323
        // Predicated region
        $region49: #{encoder_forward.1} parent=43 // pred_check
          %p325 = pneg %p119
        $region50: #{encoder_forward.1} parent=43 // pred_check_branch
          %327 = sbr.rel (%p325) target = $region52
        $region51: #{encoder_forward.1} parent=43 // pred_region
          %328 = dma.done %s321, 4096
        $region52: #{encoder_forward.1} parent=43 // pred_fallthru
          _
        %p329 = pneg %p41
        %p330 = pneg %p38
        %p331 = scmp.lt.s32.totalorder %s25, 1
        %s332 = scalar_select %p331, %s25, 1
        %s333 = smul.addr %s332, 8
        %s334 = scalar_lea.vmem %s1, %s333
        %p335 = pneg %p67
        %p336 = pneg %p64
        %s337 = sand.u32 %s80, 1
        %s338 = scalar_lea.sflag [#allocation4], %s337
        %s339 = sand.u32 %s80, 1
        %s340 = smul.addr %s339, 384
        %s341 = scalar_lea.vmem [#allocation3], %s340
        %p342 = pneg %p93
        %p343 = pneg %p90
        %s344 = sand.u32 %s106, 1
        %s345 = scalar_lea.sflag [#allocation6], %s344
        %s346 = sand.u32 %s106, 1
        %s347 = smul.addr %s346, 256
        %s348 = scalar_lea.vmem [#allocation5], %s347
        %p349 = pneg %p119
        %p350 = pneg %p116
        %p351 = scmp.lt.s32.totalorder %s25, 1
        %s352 = scalar_select %p351, %s25, 1
        %s353 = smul.addr %s352, 16
        %s354 = smul.addr %s353, 8
        %s355 = scalar_lea.vmem %s4, %s354
        %p356 = pneg %p145
        %p357 = pneg %p142
        %p358 = scmp.lt.s32.totalorder %s25, 1
        %s359 = scalar_select %p358, %s25, 1
        %s360 = smul.addr %s359, 3
        %s361 = scalar_lea.vmem %s5, %s360
        %p362 = pneg %p171
        %p363 = pneg %p168
        %p364 = pneg %p192
        %p365 = pneg %p189
        %p366 = pneg %p218
        %p367 = pneg %p215
        %p368 = scmp.lt.s32.totalorder %s25, 1
        %s369 = scalar_select %p368, %s25, 1
        %s370 = smul.addr %s369, 8
        %s371 = scalar_lea.vmem %s7, %s370
        %p372 = scmp.lt.s32.totalorder %s25, 1
        %s373 = scalar_select %p372, %s25, 1
        %s374 = smul.addr %s373, 8
        %s375 = scalar_lea.vmem %s1, %s374
        %p376 = scmp.lt.s32.totalorder %s25, 1
        %s377 = scalar_select %p376, %s25, 1
        %s378 = smul.addr %s377, 16
        %s379 = smul.addr %s378, 8
        %s380 = scalar_lea.vmem %s4, %s379
        %p381 = scmp.lt.s32.totalorder %s25, 1
        %s382 = scalar_select %p381, %s25, 1
        %s383 = smul.addr %s382, 3
        %s384 = scalar_lea.vmem %s5, %s383
        %p385 = scmp.lt.s32.totalorder %s25, 1
        %s386 = scalar_select %p385, %s25, 1
        %s387 = smul.addr %s386, 8
        %s388 = scalar_lea.vmem %s7, %s387
        %p389 = scmp.eq.s32.totalorder %s25, 0
        // Predicated region
        $region53: #{encoder_forward.1} parent=43 // pred_check
          %p390 = pneg %p389
        $region54: #{encoder_forward.1} parent=43 // pred_check_branch
          %392 = sbr.rel (%p390) target = $region56
        $region55: #{encoder_forward.1} parent=43 // pred_region
          %v393 = vld [vmem:[%s0] sm:$0xff]
          %v394 = vld [vmem:[%s0 + $0x8] sm:$0xff]
          %v395 = vld [vmem:[%s0 + $0x10] sm:$0xff]
          %v396 = vld [vmem:[%s0 + $0x18] sm:$0xff]
          %v397 = vld [vmem:[%s0 + $0x20] sm:$0xff]
          %v398 = vld [vmem:[%s0 + $0x28] sm:$0xff]
          %v399 = vld [vmem:[%s0 + $0x30] sm:$0xff]
          %v400 = vld [vmem:[%s0 + $0x38] sm:$0xff]
          %401 = vst [vmem:[%s6] sm:$0xff] %v393
          %402 = vst [vmem:[%s6 + $0x8] sm:$0xff] %v394
          %403 = vst [vmem:[%s6 + $0x10] sm:$0xff] %v395
          %404 = vst [vmem:[%s6 + $0x18] sm:$0xff] %v396
          %405 = vst [vmem:[%s6 + $0x20] sm:$0xff] %v397
          %406 = vst [vmem:[%s6 + $0x28] sm:$0xff] %v398
          %407 = vst [vmem:[%s6 + $0x30] sm:$0xff] %v399
          %408 = vst [vmem:[%s6 + $0x38] sm:$0xff] %v400
        $region56: #{encoder_forward.1} parent=43 // pred_fallthru
          _
        %v409 = vld [vmem:[%s6] sm:$0xff]
        %v410 = vld [vmem:[%s6 + $0x8] sm:$0xff]
        %v411 = vld [vmem:[%s6 + $0x10] sm:$0xff]
        %v412 = vld [vmem:[%s6 + $0x18] sm:$0xff]
        %v413 = vld [vmem:[%s6 + $0x20] sm:$0xff]
        %v414 = vld [vmem:[%s6 + $0x28] sm:$0xff]
        %v415 = vld [vmem:[%s6 + $0x30] sm:$0xff]
        %v416 = vld [vmem:[%s6 + $0x38] sm:$0xff]
        %v417 = vld [vmem:[%s315] sm:$0xff]
        %v418 = vld [vmem:[%s315 + $0x8] sm:$0xff]
        %v419 = vld [vmem:[%s315 + $0x10] sm:$0xff]
        %v420 = vld [vmem:[%s315 + $0x18] sm:$0xff]
        %v421 = vld [vmem:[%s315 + $0x20] sm:$0xff]
        %v422 = vld [vmem:[%s315 + $0x28] sm:$0xff]
        %v423 = vld [vmem:[%s315 + $0x30] sm:$0xff]
        %v424 = vld [vmem:[%s315 + $0x38] sm:$0xff]
        %v425 = vld [vmem:[%s315 + $0x40] sm:$0xff]
        %v426 = vld [vmem:[%s315 + $0x48] sm:$0xff]
        %v427 = vld [vmem:[%s315 + $0x50] sm:$0xff]
        %v428 = vld [vmem:[%s315 + $0x58] sm:$0xff]
        %v429 = vld [vmem:[%s315 + $0x60] sm:$0xff]
        %v430 = vld [vmem:[%s315 + $0x68] sm:$0xff]
        %v431 = vld [vmem:[%s315 + $0x70] sm:$0xff]
        %v432 = vld [vmem:[%s315 + $0x78] sm:$0xff]
        %v433 = vld [vmem:[%s315 + $0x80] sm:$0xff]
        %v434 = vld [vmem:[%s315 + $0x88] sm:$0xff]
        %v435 = vld [vmem:[%s315 + $0x90] sm:$0xff]
        %v436 = vld [vmem:[%s315 + $0x98] sm:$0xff]
        %v437 = vld [vmem:[%s315 + $0xa0] sm:$0xff]
        %v438 = vld [vmem:[%s315 + $0xa8] sm:$0xff]
        %v439 = vld [vmem:[%s315 + $0xb0] sm:$0xff]
        %v440 = vld [vmem:[%s315 + $0xb8] sm:$0xff]
        %v441 = vld [vmem:[%s315 + $0xc0] sm:$0xff]
        %v442 = vld [vmem:[%s315 + $0xc8] sm:$0xff]
        %v443 = vld [vmem:[%s315 + $0xd0] sm:$0xff]
        %v444 = vld [vmem:[%s315 + $0xd8] sm:$0xff]
        %v445 = vld [vmem:[%s315 + $0xe0] sm:$0xff]
        %v446 = vld [vmem:[%s315 + $0xe8] sm:$0xff]
        %v447 = vld [vmem:[%s315 + $0xf0] sm:$0xff]
        %v448 = vld [vmem:[%s315 + $0xf8] sm:$0xff]
        %v449 = vld [vmem:[%s315 + $0x100] sm:$0xff]
        %v450 = vld [vmem:[%s315 + $0x108] sm:$0xff]
        %v451 = vld [vmem:[%s315 + $0x110] sm:$0xff]
        %v452 = vld [vmem:[%s315 + $0x118] sm:$0xff]
        %v453 = vld [vmem:[%s315 + $0x120] sm:$0xff]
        %v454 = vld [vmem:[%s315 + $0x128] sm:$0xff]
        %v455 = vld [vmem:[%s315 + $0x130] sm:$0xff]
        %v456 = vld [vmem:[%s315 + $0x138] sm:$0xff]
        %v457 = vld [vmem:[%s315 + $0x140] sm:$0xff]
        %v458 = vld [vmem:[%s315 + $0x148] sm:$0xff]
        %v459 = vld [vmem:[%s315 + $0x150] sm:$0xff]
        %v460 = vld [vmem:[%s315 + $0x158] sm:$0xff]
        %v461 = vld [vmem:[%s315 + $0x160] sm:$0xff]
        %v462 = vld [vmem:[%s315 + $0x168] sm:$0xff]
        %v463 = vld [vmem:[%s315 + $0x170] sm:$0xff]
        %v464 = vld [vmem:[%s315 + $0x178] sm:$0xff]
        %v465 = vld [vmem:[%s384] sm:$0x7]
        %v467 = vlaneseq
        %v468 = vshrl.u32 %v467, 7
        %v469 = vsub.s32 0, %v468
        %v470 = vrot.slane %v465, %v469
        %v471 = vlaneseq
        %v472 = vshrl.u32 %v471, 7
        %v473 = vsub.s32 1, %v472
        %v474 = vrot.slane %v465, %v473
        %v475 = vlaneseq
        %v476 = vshrl.u32 %v475, 7
        %v477 = vsub.s32 2, %v476
        %v478 = vrot.slane %v465, %v477
        %482 = vmatprep.subr.mxu0 %v418
        %483 = vmatpush1.msra.mxu0 %v417
        %484 = vmatprep.subr.mxu0 %v421
        %485 = vmatpush1.msra.mxu0 %v420
        %486 = vmatprep.subr.mxu0 %v424
        %487 = vmatpush1.msra.mxu0 %v423
        %488 = vmatprep.subr.mxu0 %v427
        %489 = vmatpush1.msra.mxu0 %v426
        %490 = vmatprep.subr.mxu0 %v430
        %491 = vmatpush1.msra.mxu0 %v429
        %492 = vmatprep.subr.mxu0 %v433
        %493 = vmatpush1.msra.mxu0 %v432
        %494 = vmatprep.subr.mxu0 %v436
        %495 = vmatpush1.msra.mxu0 %v435
        %496 = vmatprep.subr.mxu0 %v439
        %497 = vmatpush1.msra.mxu0 %v438
        %498 = vmatprep.subr.mxu0 %v442
        %499 = vmatpush1.msra.mxu0 %v441
        %500 = vmatprep.subr.mxu0 %v445
        %501 = vmatpush1.msra.mxu0 %v444
        %502 = vmatprep.subr.mxu0 %v448
        %503 = vmatpush1.msra.mxu0 %v447
        %504 = vmatprep.subr.mxu0 %v451
        %505 = vmatpush1.msra.mxu0 %v450
        %506 = vmatprep.subr.mxu0 %v454
        %507 = vmatpush1.msra.mxu0 %v453
        %508 = vmatprep.subr.mxu0 %v457
        %509 = vmatpush1.msra.mxu0 %v456
        %510 = vmatprep.subr.mxu0 %v460
        %511 = vmatpush1.msra.mxu0 %v459
        %512 = vmatprep.subr.mxu0 %v463
        %513 = vmatpush1.msra.mxu0 %v462
        %514 = vmatprep.subr.mxu0 0.0
        %515 = vmatpush1.msra.mxu0 0.0
        %516 = vmatprep.subr.mxu0 0.0
        %517 = vmatpush1.msra.mxu0 0.0
        %518 = vmatprep.subr.mxu0 0.0
        %519 = vmatpush1.msra.mxu0 0.0
        %520 = vmatprep.subr.mxu0 0.0
        %521 = vmatpush1.msra.mxu0 0.0
        %522 = vmatprep.subr.mxu0 0.0
        %523 = vmatpush1.msra.mxu0 0.0
        %524 = vmatprep.subr.mxu0 0.0
        %525 = vmatpush1.msra.mxu0 0.0
        %526 = vmatprep.subr.mxu0 0.0
        %527 = vmatpush1.msra.mxu0 0.0
        %528 = vmatprep.subr.mxu0 0.0
        %529 = vmatpush1.msra.mxu0 0.0
        %530 = vmatprep.subr.mxu0 0.0
        %531 = vmatpush1.msra.mxu0 0.0
        %532 = vmatprep.subr.mxu0 0.0
        %533 = vmatpush1.msra.mxu0 0.0
        %534 = vmatprep.subr.mxu0 0.0
        %535 = vmatpush1.msra.mxu0 0.0
        %536 = vmatprep.subr.mxu0 0.0
        %537 = vmatpush1.msra.mxu0 0.0
        %538 = vmatprep.subr.mxu0 0.0
        %539 = vmatpush1.msra.mxu0 0.0
        %540 = vmatprep.subr.mxu0 0.0
        %541 = vmatpush1.msra.mxu0 0.0
        %542 = vmatprep.subr.mxu0 0.0
        %543 = vmatpush1.msra.mxu0 0.0
        %544 = vmatprep.subr.mxu0 0.0
        %545 = vmatpush1.msra.mxu0 0.0
        %546 = vmatprep.mubr.f32.mxu0 0.0
        %547 = vmatmul.mubr.f32.gmra.mrb[0].mxu0 %v409
        %v548 = vpop.f32.mrb[0].mxu0
        %v549 = vadd.f32 %v470, %v548
        %v550 = vpop.f32.mrb[0].mxu0
        %v551 = vadd.f32 %v474, %v550
        %552 = vmatprep.mubr.f32.mxu0 0.0
        %553 = vmatmul.mubr.f32.gmra.mrb[0].mxu0 %v410
        %v554 = vpop.f32.mrb[0].mxu0
        %v555 = vadd.f32 %v470, %v554
        %v556 = vpop.f32.mrb[0].mxu0
        %v557 = vadd.f32 %v474, %v556
        %558 = vmatprep.mubr.f32.mxu0 0.0
        %559 = vmatmul.mubr.f32.gmra.mrb[0].mxu0 %v411
        %v560 = vpop.f32.mrb[0].mxu0
        %v561 = vadd.f32 %v470, %v560
        %v562 = vpop.f32.mrb[0].mxu0
        %v563 = vadd.f32 %v474, %v562
        %564 = vmatprep.mubr.f32.mxu0 0.0
        %565 = vmatmul.mubr.f32.gmra.mrb[0].mxu0 %v412
        %v566 = vpop.f32.mrb[0].mxu0
        %v567 = vadd.f32 %v470, %v566
        %v568 = vpop.f32.mrb[0].mxu0
        %v569 = vadd.f32 %v474, %v568
        %570 = vmatprep.mubr.f32.mxu0 0.0
        %571 = vmatmul.mubr.f32.gmra.mrb[0].mxu0 %v413
        %v572 = vpop.f32.mrb[0].mxu0
        %v573 = vadd.f32 %v470, %v572
        %v574 = vpop.f32.mrb[0].mxu0
        %v575 = vadd.f32 %v474, %v574
        %576 = vmatprep.mubr.f32.mxu0 0.0
        %577 = vmatmul.mubr.f32.gmra.mrb[0].mxu0 %v414
        %v578 = vpop.f32.mrb[0].mxu0
        %v579 = vadd.f32 %v470, %v578
        %v580 = vpop.f32.mrb[0].mxu0
        %v581 = vadd.f32 %v474, %v580
        %582 = vmatprep.mubr.f32.mxu0 0.0
        %583 = vmatmul.mubr.f32.gmra.mrb[0].mxu0 %v415
        %v584 = vpop.f32.mrb[0].mxu0
        %v585 = vadd.f32 %v470, %v584
        %v586 = vpop.f32.mrb[0].mxu0
        %v587 = vadd.f32 %v474, %v586
        %588 = vmatprep.mubr.f32.mxu0 0.0
        %589 = vmatmul.mubr.f32.gmra.mrb[0].mxu0 %v416
        %v590 = vpop.f32.mrb[0].mxu0
        %v591 = vadd.f32 %v470, %v590
        %v592 = vpop.f32.mrb[0].mxu0
        %v593 = vadd.f32 %v474, %v592
        %594 = vdwg.mxu0
        %595 = vmatprep.subr.mxu0 0.0
        %596 = vmatpush1.msra.mxu0 %v419
        %597 = vmatprep.subr.mxu0 0.0
        %598 = vmatpush1.msra.mxu0 %v422
        %599 = vmatprep.subr.mxu0 0.0
        %600 = vmatpush1.msra.mxu0 %v425
        %601 = vmatprep.subr.mxu0 0.0
        %602 = vmatpush1.msra.mxu0 %v428
        %603 = vmatprep.subr.mxu0 0.0
        %604 = vmatpush1.msra.mxu0 %v431
        %605 = vmatprep.subr.mxu0 0.0
        %606 = vmatpush1.msra.mxu0 %v434
        %607 = vmatprep.subr.mxu0 0.0
        %608 = vmatpush1.msra.mxu0 %v437
        %609 = vmatprep.subr.mxu0 0.0
        %610 = vmatpush1.msra.mxu0 %v440
        %611 = vmatprep.subr.mxu0 0.0
        %612 = vmatpush1.msra.mxu0 %v443
        %613 = vmatprep.subr.mxu0 0.0
        %614 = vmatpush1.msra.mxu0 %v446
        %615 = vmatprep.subr.mxu0 0.0
        %616 = vmatpush1.msra.mxu0 %v449
        %617 = vmatprep.subr.mxu0 0.0
        %618 = vmatpush1.msra.mxu0 %v452
        %619 = vmatprep.subr.mxu0 0.0
        %620 = vmatpush1.msra.mxu0 %v455
        %621 = vmatprep.subr.mxu0 0.0
        %622 = vmatpush1.msra.mxu0 %v458
        %623 = vmatprep.subr.mxu0 0.0
        %624 = vmatpush1.msra.mxu0 %v461
        %625 = vmatprep.subr.mxu0 0.0
        %626 = vmatpush1.msra.mxu0 %v464
        %627 = vmatprep.subr.mxu0 0.0
        %628 = vmatpush1.msra.mxu0 0.0
        %629 = vmatprep.subr.mxu0 0.0
        %630 = vmatpush1.msra.mxu0 0.0
        %631 = vmatprep.subr.mxu0 0.0
        %632 = vmatpush1.msra.mxu0 0.0
        %633 = vmatprep.subr.mxu0 0.0
        %634 = vmatpush1.msra.mxu0 0.0
        %635 = vmatprep.subr.mxu0 0.0
        %636 = vmatpush1.msra.mxu0 0.0
        %637 = vmatprep.subr.mxu0 0.0
        %638 = vmatpush1.msra.mxu0 0.0
        %639 = vmatprep.subr.mxu0 0.0
        %640 = vmatpush1.msra.mxu0 0.0
        %641 = vmatprep.subr.mxu0 0.0
        %642 = vmatpush1.msra.mxu0 0.0
        %643 = vmatprep.subr.mxu0 0.0
        %644 = vmatpush1.msra.mxu0 0.0
        %645 = vmatprep.subr.mxu0 0.0
        %646 = vmatpush1.msra.mxu0 0.0
        %647 = vmatprep.subr.mxu0 0.0
        %648 = vmatpush1.msra.mxu0 0.0
        %649 = vmatprep.subr.mxu0 0.0
        %650 = vmatpush1.msra.mxu0 0.0
        %651 = vmatprep.subr.mxu0 0.0
        %652 = vmatpush1.msra.mxu0 0.0
        %653 = vmatprep.subr.mxu0 0.0
        %654 = vmatpush1.msra.mxu0 0.0
        %655 = vmatprep.subr.mxu0 0.0
        %656 = vmatpush1.msra.mxu0 0.0
        %657 = vmatprep.subr.mxu0 0.0
        %658 = vmatpush1.msra.mxu0 0.0
        %659 = vmatprep.mubr.f32.mxu0 0.0
        %660 = vmatmul.mubr.f32.gmra.mrb[0].mxu0 %v409
        %v661 = vpop.f32.mrb[0].mxu0
        %v662 = vadd.f32 %v478, %v661
        %v663 = vpop.f32.mrb[0].mxu0
        %664 = vmatprep.mubr.f32.mxu0 0.0
        %665 = vmatmul.mubr.f32.gmra.mrb[0].mxu0 %v410
        %v666 = vpop.f32.mrb[0].mxu0
        %v667 = vadd.f32 %v478, %v666
        %v668 = vpop.f32.mrb[0].mxu0
        %669 = vmatprep.mubr.f32.mxu0 0.0
        %670 = vmatmul.mubr.f32.gmra.mrb[0].mxu0 %v411
        %v671 = vpop.f32.mrb[0].mxu0
        %v672 = vadd.f32 %v478, %v671
        %v673 = vpop.f32.mrb[0].mxu0
        %674 = vmatprep.mubr.f32.mxu0 0.0
        %675 = vmatmul.mubr.f32.gmra.mrb[0].mxu0 %v412
        %v676 = vpop.f32.mrb[0].mxu0
        %v677 = vadd.f32 %v478, %v676
        %v678 = vpop.f32.mrb[0].mxu0
        %679 = vmatprep.mubr.f32.mxu0 0.0
        %680 = vmatmul.mubr.f32.gmra.mrb[0].mxu0 %v413
        %v681 = vpop.f32.mrb[0].mxu0
        %v682 = vadd.f32 %v478, %v681
        %v683 = vpop.f32.mrb[0].mxu0
        %684 = vmatprep.mubr.f32.mxu0 0.0
        %685 = vmatmul.mubr.f32.gmra.mrb[0].mxu0 %v414
        %v686 = vpop.f32.mrb[0].mxu0
        %v687 = vadd.f32 %v478, %v686
        %v688 = vpop.f32.mrb[0].mxu0
        %689 = vmatprep.mubr.f32.mxu0 0.0
        %690 = vmatmul.mubr.f32.gmra.mrb[0].mxu0 %v415
        %v691 = vpop.f32.mrb[0].mxu0
        %v692 = vadd.f32 %v478, %v691
        %v693 = vpop.f32.mrb[0].mxu0
        %694 = vmatprep.mubr.f32.mxu0 0.0
        %695 = vmatmul.mubr.f32.gmra.mrb[0].mxu0 %v416
        %v696 = vpop.f32.mrb[0].mxu0
        %v697 = vadd.f32 %v478, %v696
        %v698 = vpop.f32.mrb[0].mxu0
        %699 = vdwg.mxu0
        %700 = vst [vmem:[#allocation2] sm:$0xff] %v549
        %701 = vst [vmem:[#allocation2 + $0x8] sm:$0xff] %v551
        %702 = vst [vmem:[#allocation2 + $0x10] sm:$0xff] %v662
        %703 = vst [vmem:[#allocation2 + $0x18] sm:$0xff] %v555
        %704 = vst [vmem:[#allocation2 + $0x20] sm:$0xff] %v557
        %705 = vst [vmem:[#allocation2 + $0x28] sm:$0xff] %v667
        %706 = vst [vmem:[#allocation2 + $0x30] sm:$0xff] %v561
        %707 = vst [vmem:[#allocation2 + $0x38] sm:$0xff] %v563
        %708 = vst [vmem:[#allocation2 + $0x40] sm:$0xff] %v672
        %709 = vst [vmem:[#allocation2 + $0x48] sm:$0xff] %v567
        %710 = vst [vmem:[#allocation2 + $0x50] sm:$0xff] %v569
        %711 = vst [vmem:[#allocation2 + $0x58] sm:$0xff] %v677
        %712 = vst [vmem:[#allocation2 + $0x60] sm:$0xff] %v573
        %713 = vst [vmem:[#allocation2 + $0x68] sm:$0xff] %v575
        %714 = vst [vmem:[#allocation2 + $0x70] sm:$0xff] %v682
        %715 = vst [vmem:[#allocation2 + $0x78] sm:$0xff] %v579
        %716 = vst [vmem:[#allocation2 + $0x80] sm:$0xff] %v581
        %717 = vst [vmem:[#allocation2 + $0x88] sm:$0xff] %v687
        %718 = vst [vmem:[#allocation2 + $0x90] sm:$0xff] %v585
        %719 = vst [vmem:[#allocation2 + $0x98] sm:$0xff] %v587
        %720 = vst [vmem:[#allocation2 + $0xa0] sm:$0xff] %v692
        %721 = vst [vmem:[#allocation2 + $0xa8] sm:$0xff] %v591
        %722 = vst [vmem:[#allocation2 + $0xb0] sm:$0xff] %v593
        %723 = vst [vmem:[#allocation2 + $0xb8] sm:$0xff] %v697
        %v724 = vld [vmem:[%s324] sm:$0xff]
        %v725 = vld [vmem:[%s324 + $0x8] sm:$0xff]
        %v726 = vld [vmem:[%s324 + $0x10] sm:$0xff]
        %v727 = vld [vmem:[%s324 + $0x18] sm:$0xff]
        %v728 = vld [vmem:[%s324 + $0x20] sm:$0xff]
        %v729 = vld [vmem:[%s324 + $0x28] sm:$0xff]
        %v730 = vld [vmem:[%s324 + $0x30] sm:$0xff]
        %v731 = vld [vmem:[%s324 + $0x38] sm:$0xff]
        %v732 = vld [vmem:[%s324 + $0x40] sm:$0xff]
        %v733 = vld [vmem:[%s324 + $0x48] sm:$0xff]
        %v734 = vld [vmem:[%s324 + $0x50] sm:$0xff]
        %v735 = vld [vmem:[%s324 + $0x58] sm:$0xff]
        %v736 = vld [vmem:[%s324 + $0x60] sm:$0xff]
        %v737 = vld [vmem:[%s324 + $0x68] sm:$0xff]
        %v738 = vld [vmem:[%s324 + $0x70] sm:$0xff]
        %v739 = vld [vmem:[%s324 + $0x78] sm:$0xff]
        %v740 = vld [vmem:[%s324 + $0x80] sm:$0xff]
        %v741 = vld [vmem:[%s324 + $0x88] sm:$0xff]
        %v742 = vld [vmem:[%s324 + $0x90] sm:$0xff]
        %v743 = vld [vmem:[%s324 + $0x98] sm:$0xff]
        %v744 = vld [vmem:[%s324 + $0xa0] sm:$0xff]
        %v745 = vld [vmem:[%s324 + $0xa8] sm:$0xff]
        %v746 = vld [vmem:[%s324 + $0xb0] sm:$0xff]
        %v747 = vld [vmem:[%s324 + $0xb8] sm:$0xff]
        %v748 = vld [vmem:[%s324 + $0xc0] sm:$0xff]
        %v749 = vld [vmem:[%s324 + $0xc8] sm:$0xff]
        %v750 = vld [vmem:[%s324 + $0xd0] sm:$0xff]
        %v751 = vld [vmem:[%s324 + $0xd8] sm:$0xff]
        %v752 = vld [vmem:[%s324 + $0xe0] sm:$0xff]
        %v753 = vld [vmem:[%s324 + $0xe8] sm:$0xff]
        %v754 = vld [vmem:[%s324 + $0xf0] sm:$0xff]
        %v755 = vld [vmem:[%s324 + $0xf8] sm:$0xff]
        %v756 = vld [vmem:[%s380] sm:$0xff]
        %v757 = vld [vmem:[%s380 + $0x8] sm:$0xff]
        %v758 = vld [vmem:[%s380 + $0x10] sm:$0xff]
        %v759 = vld [vmem:[%s380 + $0x18] sm:$0xff]
        %v760 = vld [vmem:[%s380 + $0x20] sm:$0xff]
        %v761 = vld [vmem:[%s380 + $0x28] sm:$0xff]
        %v762 = vld [vmem:[%s380 + $0x30] sm:$0xff]
        %v763 = vld [vmem:[%s380 + $0x38] sm:$0xff]
        %v764 = vld [vmem:[%s380 + $0x40] sm:$0xff]
        %v765 = vld [vmem:[%s380 + $0x48] sm:$0xff]
        %v766 = vld [vmem:[%s380 + $0x50] sm:$0xff]
        %v767 = vld [vmem:[%s380 + $0x58] sm:$0xff]
        %v768 = vld [vmem:[%s380 + $0x60] sm:$0xff]
        %v769 = vld [vmem:[%s380 + $0x68] sm:$0xff]
        %v770 = vld [vmem:[%s380 + $0x70] sm:$0xff]
        %v771 = vld [vmem:[%s380 + $0x78] sm:$0xff]
        %v772 = vld [vmem:[%s375] sm:$0xff]
        %s773 = smul.u32 0, 3
        %s774 = smul.addr %s773, 8
        %s775 = scalar_lea.vmem [#allocation2], %s774
        %v776 = vld [vmem:[%s775] sm:$0xff]
        %v777 = vld [vmem:[%s775 + $0x8] sm:$0xff]
        %v778 = vld [vmem:[%s775 + $0x10] sm:$0xff]
        %779 = vmatprep.subr.mxu0 %v725
        %780 = vmatpush1.msra.mxu0 %v724
        %781 = vmatprep.subr.mxu0 %v727
        %782 = vmatpush1.msra.mxu0 %v726
        %783 = vmatprep.subr.mxu0 %v729
        %784 = vmatpush1.msra.mxu0 %v728
        %785 = vmatprep.subr.mxu0 %v731
        %786 = vmatpush1.msra.mxu0 %v730
        %787 = vmatprep.subr.mxu0 %v733
        %788 = vmatpush1.msra.mxu0 %v732
        %789 = vmatprep.subr.mxu0 %v735
        %790 = vmatpush1.msra.mxu0 %v734
        %791 = vmatprep.subr.mxu0 %v737
        %792 = vmatpush1.msra.mxu0 %v736
        %793 = vmatprep.subr.mxu0 %v739
        %794 = vmatpush1.msra.mxu0 %v738
        %795 = vmatprep.subr.mxu0 %v741
        %796 = vmatpush1.msra.mxu0 %v740
        %797 = vmatprep.subr.mxu0 %v743
        %798 = vmatpush1.msra.mxu0 %v742
        %799 = vmatprep.subr.mxu0 %v745
        %800 = vmatpush1.msra.mxu0 %v744
        %801 = vmatprep.subr.mxu0 %v747
        %802 = vmatpush1.msra.mxu0 %v746
        %803 = vmatprep.subr.mxu0 %v749
        %804 = vmatpush1.msra.mxu0 %v748
        %805 = vmatprep.subr.mxu0 %v751
        %806 = vmatpush1.msra.mxu0 %v750
        %807 = vmatprep.subr.mxu0 %v753
        %808 = vmatpush1.msra.mxu0 %v752
        %809 = vmatprep.subr.mxu0 %v755
        %810 = vmatpush1.msra.mxu0 %v754
        %811 = vmatprep.subr.mxu0 0.0
        %812 = vmatpush1.msra.mxu0 0.0
        %813 = vmatprep.subr.mxu0 0.0
        %814 = vmatpush1.msra.mxu0 0.0
        %815 = vmatprep.subr.mxu0 0.0
        %816 = vmatpush1.msra.mxu0 0.0
        %817 = vmatprep.subr.mxu0 0.0
        %818 = vmatpush1.msra.mxu0 0.0
        %819 = vmatprep.subr.mxu0 0.0
        %820 = vmatpush1.msra.mxu0 0.0
        %821 = vmatprep.subr.mxu0 0.0
        %822 = vmatpush1.msra.mxu0 0.0
        %823 = vmatprep.subr.mxu0 0.0
        %824 = vmatpush1.msra.mxu0 0.0
        %825 = vmatprep.subr.mxu0 0.0
        %826 = vmatpush1.msra.mxu0 0.0
        %827 = vmatprep.subr.mxu0 0.0
        %828 = vmatpush1.msra.mxu0 0.0
        %829 = vmatprep.subr.mxu0 0.0
        %830 = vmatpush1.msra.mxu0 0.0
        %831 = vmatprep.subr.mxu0 0.0
        %832 = vmatpush1.msra.mxu0 0.0
        %833 = vmatprep.subr.mxu0 0.0
        %834 = vmatpush1.msra.mxu0 0.0
        %835 = vmatprep.subr.mxu0 0.0
        %836 = vmatpush1.msra.mxu0 0.0
        %837 = vmatprep.subr.mxu0 0.0
        %838 = vmatpush1.msra.mxu0 0.0
        %839 = vmatprep.subr.mxu0 0.0
        %840 = vmatpush1.msra.mxu0 0.0
        %841 = vmatprep.subr.mxu0 0.0
        %842 = vmatpush1.msra.mxu0 0.0
        %843 = vmatprep.mubr.f32.mxu0 0.0
        %844 = vmatmul.mubr.f32.gmra.mrb[0].mxu0 %v772
        %v845 = vpop.f32.mrb[0].mxu0
        %v846 = vadd.f32 0.0, %v845
        %v847 = vpop.f32.mrb[0].mxu0
        %v848 = vadd.f32 0.0, %v847
        %849 = vdwg.mxu0
        %v850 = vadd.f32 %v776, %v846
        %v851 = vadd.f32 %v777, %v848
        %v852 = vxor.u32 %v850, 2147483648
        %v853 = vxor.u32 %v851, 2147483648
        %v854 = vmul.f32 %v852, 1.442695
        %v855 = vpow.pop %v854
        %v856 = vmul.f32 %v853, 1.442695
        %v857 = vpow.pop %v856
        %v858 = vadd.f32 %v855, 1.0
        %v859 = vadd.f32 %v857, 1.0
        %v860 = vrcp.pop %v858
        %v861 = vmul.f32 1.0, %v860
        %v862 = vrcp.pop %v859
        %v863 = vmul.f32 1.0, %v862
        %v864 = vmul.f32 %v861, %v772
        %865 = vmatprep.subr.mxu0 0.0
        %866 = vmatpush1.msra.mxu0 %v756
        %867 = vmatprep.subr.mxu0 0.0
        %868 = vmatpush1.msra.mxu0 %v757
        %869 = vmatprep.subr.mxu0 0.0
        %870 = vmatpush1.msra.mxu0 %v758
        %871 = vmatprep.subr.mxu0 0.0
        %872 = vmatpush1.msra.mxu0 %v759
        %873 = vmatprep.subr.mxu0 0.0
        %874 = vmatpush1.msra.mxu0 %v760
        %875 = vmatprep.subr.mxu0 0.0
        %876 = vmatpush1.msra.mxu0 %v761
        %877 = vmatprep.subr.mxu0 0.0
        %878 = vmatpush1.msra.mxu0 %v762
        %879 = vmatprep.subr.mxu0 0.0
        %880 = vmatpush1.msra.mxu0 %v763
        %881 = vmatprep.subr.mxu0 0.0
        %882 = vmatpush1.msra.mxu0 %v764
        %883 = vmatprep.subr.mxu0 0.0
        %884 = vmatpush1.msra.mxu0 %v765
        %885 = vmatprep.subr.mxu0 0.0
        %886 = vmatpush1.msra.mxu0 %v766
        %887 = vmatprep.subr.mxu0 0.0
        %888 = vmatpush1.msra.mxu0 %v767
        %889 = vmatprep.subr.mxu0 0.0
        %890 = vmatpush1.msra.mxu0 %v768
        %891 = vmatprep.subr.mxu0 0.0
        %892 = vmatpush1.msra.mxu0 %v769
        %893 = vmatprep.subr.mxu0 0.0
        %894 = vmatpush1.msra.mxu0 %v770
        %895 = vmatprep.subr.mxu0 0.0
        %896 = vmatpush1.msra.mxu0 %v771
        %897 = vmatprep.subr.mxu0 0.0
        %898 = vmatpush1.msra.mxu0 0.0
        %899 = vmatprep.subr.mxu0 0.0
        %900 = vmatpush1.msra.mxu0 0.0
        %901 = vmatprep.subr.mxu0 0.0
        %902 = vmatpush1.msra.mxu0 0.0
        %903 = vmatprep.subr.mxu0 0.0
        %904 = vmatpush1.msra.mxu0 0.0
        %905 = vmatprep.subr.mxu0 0.0
        %906 = vmatpush1.msra.mxu0 0.0
        %907 = vmatprep.subr.mxu0 0.0
        %908 = vmatpush1.msra.mxu0 0.0
        %909 = vmatprep.subr.mxu0 0.0
        %910 = vmatpush1.msra.mxu0 0.0
        %911 = vmatprep.subr.mxu0 0.0
        %912 = vmatpush1.msra.mxu0 0.0
        %913 = vmatprep.subr.mxu0 0.0
        %914 = vmatpush1.msra.mxu0 0.0
        %915 = vmatprep.subr.mxu0 0.0
        %916 = vmatpush1.msra.mxu0 0.0
        %917 = vmatprep.subr.mxu0 0.0
        %918 = vmatpush1.msra.mxu0 0.0
        %919 = vmatprep.subr.mxu0 0.0
        %920 = vmatpush1.msra.mxu0 0.0
        %921 = vmatprep.subr.mxu0 0.0
        %922 = vmatpush1.msra.mxu0 0.0
        %923 = vmatprep.subr.mxu0 0.0
        %924 = vmatpush1.msra.mxu0 0.0
        %925 = vmatprep.subr.mxu0 0.0
        %926 = vmatpush1.msra.mxu0 0.0
        %927 = vmatprep.subr.mxu0 0.0
        %928 = vmatpush1.msra.mxu0 0.0
        %929 = vmatprep.mubr.f32.mxu0 0.0
        %930 = vmatmul.mubr.f32.gmra.mrb[0].mxu0 %v864
        %v931 = vpop.f32.mrb[0].mxu0
        %v932 = vadd.f32 0.0, %v931
        %v933 = vpop.f32.mrb[0].mxu0
        %934 = vdwg.mxu0
        %v935 = vadd.f32 %v778, %v932
        %v936 = vtanh.pop %v935
        %v937 = vsub.f32 %v772, %v936
        %v938 = vmul.f32 %v863, %v937
        %v939 = vadd.f32 %v936, %v938
        %940 = vst [vmem:[%s6] sm:$0xff] %v939
        %s941 = smul.u32 1, 3
        %s942 = smul.addr %s941, 8
        %s943 = scalar_lea.vmem [#allocation2], %s942
        %v944 = vld [vmem:[%s943] sm:$0xff]
        %v945 = vld [vmem:[%s943 + $0x8] sm:$0xff]
        %v946 = vld [vmem:[%s943 + $0x10] sm:$0xff]
        %947 = vmatprep.subr.mxu0 %v725
        %948 = vmatpush1.msra.mxu0 %v724
        %949 = vmatprep.subr.mxu0 %v727
        %950 = vmatpush1.msra.mxu0 %v726
        %951 = vmatprep.subr.mxu0 %v729
        %952 = vmatpush1.msra.mxu0 %v728
        %953 = vmatprep.subr.mxu0 %v731
        %954 = vmatpush1.msra.mxu0 %v730
        %955 = vmatprep.subr.mxu0 %v733
        %956 = vmatpush1.msra.mxu0 %v732
        %957 = vmatprep.subr.mxu0 %v735
        %958 = vmatpush1.msra.mxu0 %v734
        %959 = vmatprep.subr.mxu0 %v737
        %960 = vmatpush1.msra.mxu0 %v736
        %961 = vmatprep.subr.mxu0 %v739
        %962 = vmatpush1.msra.mxu0 %v738
        %963 = vmatprep.subr.mxu0 %v741
        %964 = vmatpush1.msra.mxu0 %v740
        %965 = vmatprep.subr.mxu0 %v743
        %966 = vmatpush1.msra.mxu0 %v742
        %967 = vmatprep.subr.mxu0 %v745
        %968 = vmatpush1.msra.mxu0 %v744
        %969 = vmatprep.subr.mxu0 %v747
        %970 = vmatpush1.msra.mxu0 %v746
        %971 = vmatprep.subr.mxu0 %v749
        %972 = vmatpush1.msra.mxu0 %v748
        %973 = vmatprep.subr.mxu0 %v751
        %974 = vmatpush1.msra.mxu0 %v750
        %975 = vmatprep.subr.mxu0 %v753
        %976 = vmatpush1.msra.mxu0 %v752
        %977 = vmatprep.subr.mxu0 %v755
        %978 = vmatpush1.msra.mxu0 %v754
        %979 = vmatprep.subr.mxu0 0.0
        %980 = vmatpush1.msra.mxu0 0.0
        %981 = vmatprep.subr.mxu0 0.0
        %982 = vmatpush1.msra.mxu0 0.0
        %983 = vmatprep.subr.mxu0 0.0
        %984 = vmatpush1.msra.mxu0 0.0
        %985 = vmatprep.subr.mxu0 0.0
        %986 = vmatpush1.msra.mxu0 0.0
        %987 = vmatprep.subr.mxu0 0.0
        %988 = vmatpush1.msra.mxu0 0.0
        %989 = vmatprep.subr.mxu0 0.0
        %990 = vmatpush1.msra.mxu0 0.0
        %991 = vmatprep.subr.mxu0 0.0
        %992 = vmatpush1.msra.mxu0 0.0
        %993 = vmatprep.subr.mxu0 0.0
        %994 = vmatpush1.msra.mxu0 0.0
        %995 = vmatprep.subr.mxu0 0.0
        %996 = vmatpush1.msra.mxu0 0.0
        %997 = vmatprep.subr.mxu0 0.0
        %998 = vmatpush1.msra.mxu0 0.0
        %999 = vmatprep.subr.mxu0 0.0
        %1000 = vmatpush1.msra.mxu0 0.0
        %1001 = vmatprep.subr.mxu0 0.0
        %1002 = vmatpush1.msra.mxu0 0.0
        %1003 = vmatprep.subr.mxu0 0.0
        %1004 = vmatpush1.msra.mxu0 0.0
        %1005 = vmatprep.subr.mxu0 0.0
        %1006 = vmatpush1.msra.mxu0 0.0
        %1007 = vmatprep.subr.mxu0 0.0
        %1008 = vmatpush1.msra.mxu0 0.0
        %1009 = vmatprep.subr.mxu0 0.0
        %1010 = vmatpush1.msra.mxu0 0.0
        %1011 = vmatprep.mubr.f32.mxu0 0.0
        %1012 = vmatmul.mubr.f32.gmra.mrb[0].mxu0 %v939
        %v1013 = vpop.f32.mrb[0].mxu0
        %v1014 = vadd.f32 0.0, %v1013
        %v1015 = vpop.f32.mrb[0].mxu0
        %v1016 = vadd.f32 0.0, %v1015
        %1017 = vdwg.mxu0
        %v1018 = vadd.f32 %v944, %v1014
        %v1019 = vadd.f32 %v945, %v1016
        %v1020 = vxor.u32 %v1018, 2147483648
        %v1021 = vxor.u32 %v1019, 2147483648
        %v1022 = vmul.f32 %v1020, 1.442695
        %v1023 = vpow.pop %v1022
        %v1024 = vmul.f32 %v1021, 1.442695
        %v1025 = vpow.pop %v1024
        %v1026 = vadd.f32 %v1023, 1.0
        %v1027 = vadd.f32 %v1025, 1.0
        %v1028 = vrcp.pop %v1026
        %v1029 = vmul.f32 1.0, %v1028
        %v1030 = vrcp.pop %v1027
        %v1031 = vmul.f32 1.0, %v1030
        %v1032 = vmul.f32 %v1029, %v939
        %1033 = vmatprep.subr.mxu0 0.0
        %1034 = vmatpush1.msra.mxu0 %v756
        %1035 = vmatprep.subr.mxu0 0.0
        %1036 = vmatpush1.msra.mxu0 %v757
        %1037 = vmatprep.subr.mxu0 0.0
        %1038 = vmatpush1.msra.mxu0 %v758
        %1039 = vmatprep.subr.mxu0 0.0
        %1040 = vmatpush1.msra.mxu0 %v759
        %1041 = vmatprep.subr.mxu0 0.0
        %1042 = vmatpush1.msra.mxu0 %v760
        %1043 = vmatprep.subr.mxu0 0.0
        %1044 = vmatpush1.msra.mxu0 %v761
        %1045 = vmatprep.subr.mxu0 0.0
        %1046 = vmatpush1.msra.mxu0 %v762
        %1047 = vmatprep.subr.mxu0 0.0
        %1048 = vmatpush1.msra.mxu0 %v763
        %1049 = vmatprep.subr.mxu0 0.0
        %1050 = vmatpush1.msra.mxu0 %v764
        %1051 = vmatprep.subr.mxu0 0.0
        %1052 = vmatpush1.msra.mxu0 %v765
        %1053 = vmatprep.subr.mxu0 0.0
        %1054 = vmatpush1.msra.mxu0 %v766
        %1055 = vmatprep.subr.mxu0 0.0
        %1056 = vmatpush1.msra.mxu0 %v767
        %1057 = vmatprep.subr.mxu0 0.0
        %1058 = vmatpush1.msra.mxu0 %v768
        %1059 = vmatprep.subr.mxu0 0.0
        %1060 = vmatpush1.msra.mxu0 %v769
        %1061 = vmatprep.subr.mxu0 0.0
        %1062 = vmatpush1.msra.mxu0 %v770
        %1063 = vmatprep.subr.mxu0 0.0
        %1064 = vmatpush1.msra.mxu0 %v771
        %1065 = vmatprep.subr.mxu0 0.0
        %1066 = vmatpush1.msra.mxu0 0.0
        %1067 = vmatprep.subr.mxu0 0.0
        %1068 = vmatpush1.msra.mxu0 0.0
        %1069 = vmatprep.subr.mxu0 0.0
        %1070 = vmatpush1.msra.mxu0 0.0
        %1071 = vmatprep.subr.mxu0 0.0
        %1072 = vmatpush1.msra.mxu0 0.0
        %1073 = vmatprep.subr.mxu0 0.0
        %1074 = vmatpush1.msra.mxu0 0.0
        %1075 = vmatprep.subr.mxu0 0.0
        %1076 = vmatpush1.msra.mxu0 0.0
        %1077 = vmatprep.subr.mxu0 0.0
        %1078 = vmatpush1.msra.mxu0 0.0
        %1079 = vmatprep.subr.mxu0 0.0
        %1080 = vmatpush1.msra.mxu0 0.0
        %1081 = vmatprep.subr.mxu0 0.0
        %1082 = vmatpush1.msra.mxu0 0.0
        %1083 = vmatprep.subr.mxu0 0.0
        %1084 = vmatpush1.msra.mxu0 0.0
        %1085 = vmatprep.subr.mxu0 0.0
        %1086 = vmatpush1.msra.mxu0 0.0
        %1087 = vmatprep.subr.mxu0 0.0
        %1088 = vmatpush1.msra.mxu0 0.0
        %1089 = vmatprep.subr.mxu0 0.0
        %1090 = vmatpush1.msra.mxu0 0.0
        %1091 = vmatprep.subr.mxu0 0.0
        %1092 = vmatpush1.msra.mxu0 0.0
        %1093 = vmatprep.subr.mxu0 0.0
        %1094 = vmatpush1.msra.mxu0 0.0
        %1095 = vmatprep.subr.mxu0 0.0
        %1096 = vmatpush1.msra.mxu0 0.0
        %1097 = vmatprep.mubr.f32.mxu0 0.0
        %1098 = vmatmul.mubr.f32.gmra.mrb[0].mxu0 %v1032
        %v1099 = vpop.f32.mrb[0].mxu0
        %v1100 = vadd.f32 0.0, %v1099
        %v1101 = vpop.f32.mrb[0].mxu0
        %1102 = vdwg.mxu0
        %v1103 = vadd.f32 %v946, %v1100
        %v1104 = vtanh.pop %v1103
        %v1105 = vsub.f32 %v939, %v1104
        %v1106 = vmul.f32 %v1031, %v1105
        %v1107 = vadd.f32 %v1104, %v1106
        %s1108 = scalar_lea.vmem %s6, 8
        %1109 = vst [vmem:[%s1108] sm:$0xff] %v1107
        %s1110 = smul.u32 2, 3
        %s1111 = smul.addr %s1110, 8
        %s1112 = scalar_lea.vmem [#allocation2], %s1111
        %v1113 = vld [vmem:[%s1112] sm:$0xff]
        %v1114 = vld [vmem:[%s1112 + $0x8] sm:$0xff]
        %v1115 = vld [vmem:[%s1112 + $0x10] sm:$0xff]
        %1116 = vmatprep.subr.mxu0 %v725
        %1117 = vmatpush1.msra.mxu0 %v724
        %1118 = vmatprep.subr.mxu0 %v727
        %1119 = vmatpush1.msra.mxu0 %v726
        %1120 = vmatprep.subr.mxu0 %v729
        %1121 = vmatpush1.msra.mxu0 %v728
        %1122 = vmatprep.subr.mxu0 %v731
        %1123 = vmatpush1.msra.mxu0 %v730
        %1124 = vmatprep.subr.mxu0 %v733
        %1125 = vmatpush1.msra.mxu0 %v732
        %1126 = vmatprep.subr.mxu0 %v735
        %1127 = vmatpush1.msra.mxu0 %v734
        %1128 = vmatprep.subr.mxu0 %v737
        %1129 = vmatpush1.msra.mxu0 %v736
        %1130 = vmatprep.subr.mxu0 %v739
        %1131 = vmatpush1.msra.mxu0 %v738
        %1132 = vmatprep.subr.mxu0 %v741
        %1133 = vmatpush1.msra.mxu0 %v740
        %1134 = vmatprep.subr.mxu0 %v743
        %1135 = vmatpush1.msra.mxu0 %v742
        %1136 = vmatprep.subr.mxu0 %v745
        %1137 = vmatpush1.msra.mxu0 %v744
        %1138 = vmatprep.subr.mxu0 %v747
        %1139 = vmatpush1.msra.mxu0 %v746
        %1140 = vmatprep.subr.mxu0 %v749
        %1141 = vmatpush1.msra.mxu0 %v748
        %1142 = vmatprep.subr.mxu0 %v751
        %1143 = vmatpush1.msra.mxu0 %v750
        %1144 = vmatprep.subr.mxu0 %v753
        %1145 = vmatpush1.msra.mxu0 %v752
        %1146 = vmatprep.subr.mxu0 %v755
        %1147 = vmatpush1.msra.mxu0 %v754
        %1148 = vmatprep.subr.mxu0 0.0
        %1149 = vmatpush1.msra.mxu0 0.0
        %1150 = vmatprep.subr.mxu0 0.0
        %1151 = vmatpush1.msra.mxu0 0.0
        %1152 = vmatprep.subr.mxu0 0.0
        %1153 = vmatpush1.msra.mxu0 0.0
        %1154 = vmatprep.subr.mxu0 0.0
        %1155 = vmatpush1.msra.mxu0 0.0
        %1156 = vmatprep.subr.mxu0 0.0
        %1157 = vmatpush1.msra.mxu0 0.0
        %1158 = vmatprep.subr.mxu0 0.0
        %1159 = vmatpush1.msra.mxu0 0.0
        %1160 = vmatprep.subr.mxu0 0.0
        %1161 = vmatpush1.msra.mxu0 0.0
        %1162 = vmatprep.subr.mxu0 0.0
        %1163 = vmatpush1.msra.mxu0 0.0
        %1164 = vmatprep.subr.mxu0 0.0
        %1165 = vmatpush1.msra.mxu0 0.0
        %1166 = vmatprep.subr.mxu0 0.0
        %1167 = vmatpush1.msra.mxu0 0.0
        %1168 = vmatprep.subr.mxu0 0.0
        %1169 = vmatpush1.msra.mxu0 0.0
        %1170 = vmatprep.subr.mxu0 0.0
        %1171 = vmatpush1.msra.mxu0 0.0
        %1172 = vmatprep.subr.mxu0 0.0
        %1173 = vmatpush1.msra.mxu0 0.0
        %1174 = vmatprep.subr.mxu0 0.0
        %1175 = vmatpush1.msra.mxu0 0.0
        %1176 = vmatprep.subr.mxu0 0.0
        %1177 = vmatpush1.msra.mxu0 0.0
        %1178 = vmatprep.subr.mxu0 0.0
        %1179 = vmatpush1.msra.mxu0 0.0
        %1180 = vmatprep.mubr.f32.mxu0 0.0
        %1181 = vmatmul.mubr.f32.gmra.mrb[0].mxu0 %v1107
        %v1182 = vpop.f32.mrb[0].mxu0
        %v1183 = vadd.f32 0.0, %v1182
        %v1184 = vpop.f32.mrb[0].mxu0
        %v1185 = vadd.f32 0.0, %v1184
        %1186 = vdwg.mxu0
        %v1187 = vadd.f32 %v1113, %v1183
        %v1188 = vadd.f32 %v1114, %v1185
        %v1189 = vxor.u32 %v1187, 2147483648
        %v1190 = vxor.u32 %v1188, 2147483648
        %v1191 = vmul.f32 %v1189, 1.442695
        %v1192 = vpow.pop %v1191
        %v1193 = vmul.f32 %v1190, 1.442695
        %v1194 = vpow.pop %v1193
        %v1195 = vadd.f32 %v1192, 1.0
        %v1196 = vadd.f32 %v1194, 1.0
        %v1197 = vrcp.pop %v1195
        %v1198 = vmul.f32 1.0, %v1197
        %v1199 = vrcp.pop %v1196
        %v1200 = vmul.f32 1.0, %v1199
        %v1201 = vmul.f32 %v1198, %v1107
        %1202 = vmatprep.subr.mxu0 0.0
        %1203 = vmatpush1.msra.mxu0 %v756
        %1204 = vmatprep.subr.mxu0 0.0
        %1205 = vmatpush1.msra.mxu0 %v757
        %1206 = vmatprep.subr.mxu0 0.0
        %1207 = vmatpush1.msra.mxu0 %v758
        %1208 = vmatprep.subr.mxu0 0.0
        %1209 = vmatpush1.msra.mxu0 %v759
        %1210 = vmatprep.subr.mxu0 0.0
        %1211 = vmatpush1.msra.mxu0 %v760
        %1212 = vmatprep.subr.mxu0 0.0
        %1213 = vmatpush1.msra.mxu0 %v761
        %1214 = vmatprep.subr.mxu0 0.0
        %1215 = vmatpush1.msra.mxu0 %v762
        %1216 = vmatprep.subr.mxu0 0.0
        %1217 = vmatpush1.msra.mxu0 %v763
        %1218 = vmatprep.subr.mxu0 0.0
        %1219 = vmatpush1.msra.mxu0 %v764
        %1220 = vmatprep.subr.mxu0 0.0
        %1221 = vmatpush1.msra.mxu0 %v765
        %1222 = vmatprep.subr.mxu0 0.0
        %1223 = vmatpush1.msra.mxu0 %v766
        %1224 = vmatprep.subr.mxu0 0.0
        %1225 = vmatpush1.msra.mxu0 %v767
        %1226 = vmatprep.subr.mxu0 0.0
        %1227 = vmatpush1.msra.mxu0 %v768
        %1228 = vmatprep.subr.mxu0 0.0
        %1229 = vmatpush1.msra.mxu0 %v769
        %1230 = vmatprep.subr.mxu0 0.0
        %1231 = vmatpush1.msra.mxu0 %v770
        %1232 = vmatprep.subr.mxu0 0.0
        %1233 = vmatpush1.msra.mxu0 %v771
        %1234 = vmatprep.subr.mxu0 0.0
        %1235 = vmatpush1.msra.mxu0 0.0
        %1236 = vmatprep.subr.mxu0 0.0
        %1237 = vmatpush1.msra.mxu0 0.0
        %1238 = vmatprep.subr.mxu0 0.0
        %1239 = vmatpush1.msra.mxu0 0.0
        %1240 = vmatprep.subr.mxu0 0.0
        %1241 = vmatpush1.msra.mxu0 0.0
        %1242 = vmatprep.subr.mxu0 0.0
        %1243 = vmatpush1.msra.mxu0 0.0
        %1244 = vmatprep.subr.mxu0 0.0
        %1245 = vmatpush1.msra.mxu0 0.0
        %1246 = vmatprep.subr.mxu0 0.0
        %1247 = vmatpush1.msra.mxu0 0.0
        %1248 = vmatprep.subr.mxu0 0.0
        %1249 = vmatpush1.msra.mxu0 0.0
        %1250 = vmatprep.subr.mxu0 0.0
        %1251 = vmatpush1.msra.mxu0 0.0
        %1252 = vmatprep.subr.mxu0 0.0
        %1253 = vmatpush1.msra.mxu0 0.0
        %1254 = vmatprep.subr.mxu0 0.0
        %1255 = vmatpush1.msra.mxu0 0.0
        %1256 = vmatprep.subr.mxu0 0.0
        %1257 = vmatpush1.msra.mxu0 0.0
        %1258 = vmatprep.subr.mxu0 0.0
        %1259 = vmatpush1.msra.mxu0 0.0
        %1260 = vmatprep.subr.mxu0 0.0
        %1261 = vmatpush1.msra.mxu0 0.0
        %1262 = vmatprep.subr.mxu0 0.0
        %1263 = vmatpush1.msra.mxu0 0.0
        %1264 = vmatprep.subr.mxu0 0.0
        %1265 = vmatpush1.msra.mxu0 0.0
        %1266 = vmatprep.mubr.f32.mxu0 0.0
        %1267 = vmatmul.mubr.f32.gmra.mrb[0].mxu0 %v1201
        %v1268 = vpop.f32.mrb[0].mxu0
        %v1269 = vadd.f32 0.0, %v1268
        %v1270 = vpop.f32.mrb[0].mxu0
        %1271 = vdwg.mxu0
        %v1272 = vadd.f32 %v1115, %v1269
        %v1273 = vtanh.pop %v1272
        %v1274 = vsub.f32 %v1107, %v1273
        %v1275 = vmul.f32 %v1200, %v1274
        %v1276 = vadd.f32 %v1273, %v1275
        %s1277 = scalar_lea.vmem %s6, 16
        %1278 = vst [vmem:[%s1277] sm:$0xff] %v1276
        %s1279 = smul.u32 3, 3
        %s1280 = smul.addr %s1279, 8
        %s1281 = scalar_lea.vmem [#allocation2], %s1280
        %v1282 = vld [vmem:[%s1281] sm:$0xff]
        %v1283 = vld [vmem:[%s1281 + $0x8] sm:$0xff]
        %v1284 = vld [vmem:[%s1281 + $0x10] sm:$0xff]
        %1285 = vmatprep.subr.mxu0 %v725
        %1286 = vmatpush1.msra.mxu0 %v724
        %1287 = vmatprep.subr.mxu0 %v727
        %1288 = vmatpush1.msra.mxu0 %v726
        %1289 = vmatprep.subr.mxu0 %v729
        %1290 = vmatpush1.msra.mxu0 %v728
        %1291 = vmatprep.subr.mxu0 %v731
        %1292 = vmatpush1.msra.mxu0 %v730
        %1293 = vmatprep.subr.mxu0 %v733
        %1294 = vmatpush1.msra.mxu0 %v732
        %1295 = vmatprep.subr.mxu0 %v735
        %1296 = vmatpush1.msra.mxu0 %v734
        %1297 = vmatprep.subr.mxu0 %v737
        %1298 = vmatpush1.msra.mxu0 %v736
        %1299 = vmatprep.subr.mxu0 %v739
        %1300 = vmatpush1.msra.mxu0 %v738
        %1301 = vmatprep.subr.mxu0 %v741
        %1302 = vmatpush1.msra.mxu0 %v740
        %1303 = vmatprep.subr.mxu0 %v743
        %1304 = vmatpush1.msra.mxu0 %v742
        %1305 = vmatprep.subr.mxu0 %v745
        %1306 = vmatpush1.msra.mxu0 %v744
        %1307 = vmatprep.subr.mxu0 %v747
        %1308 = vmatpush1.msra.mxu0 %v746
        %1309 = vmatprep.subr.mxu0 %v749
        %1310 = vmatpush1.msra.mxu0 %v748
        %1311 = vmatprep.subr.mxu0 %v751
        %1312 = vmatpush1.msra.mxu0 %v750
        %1313 = vmatprep.subr.mxu0 %v753
        %1314 = vmatpush1.msra.mxu0 %v752
        %1315 = vmatprep.subr.mxu0 %v755
        %1316 = vmatpush1.msra.mxu0 %v754
        %1317 = vmatprep.subr.mxu0 0.0
        %1318 = vmatpush1.msra.mxu0 0.0
        %1319 = vmatprep.subr.mxu0 0.0
        %1320 = vmatpush1.msra.mxu0 0.0
        %1321 = vmatprep.subr.mxu0 0.0
        %1322 = vmatpush1.msra.mxu0 0.0
        %1323 = vmatprep.subr.mxu0 0.0
        %1324 = vmatpush1.msra.mxu0 0.0
        %1325 = vmatprep.subr.mxu0 0.0
        %1326 = vmatpush1.msra.mxu0 0.0
        %1327 = vmatprep.subr.mxu0 0.0
        %1328 = vmatpush1.msra.mxu0 0.0
        %1329 = vmatprep.subr.mxu0 0.0
        %1330 = vmatpush1.msra.mxu0 0.0
        %1331 = vmatprep.subr.mxu0 0.0
        %1332 = vmatpush1.msra.mxu0 0.0
        %1333 = vmatprep.subr.mxu0 0.0
        %1334 = vmatpush1.msra.mxu0 0.0
        %1335 = vmatprep.subr.mxu0 0.0
        %1336 = vmatpush1.msra.mxu0 0.0
        %1337 = vmatprep.subr.mxu0 0.0
        %1338 = vmatpush1.msra.mxu0 0.0
        %1339 = vmatprep.subr.mxu0 0.0
        %1340 = vmatpush1.msra.mxu0 0.0
        %1341 = vmatprep.subr.mxu0 0.0
        %1342 = vmatpush1.msra.mxu0 0.0
        %1343 = vmatprep.subr.mxu0 0.0
        %1344 = vmatpush1.msra.mxu0 0.0
        %1345 = vmatprep.subr.mxu0 0.0
        %1346 = vmatpush1.msra.mxu0 0.0
        %1347 = vmatprep.subr.mxu0 0.0
        %1348 = vmatpush1.msra.mxu0 0.0
        %1349 = vmatprep.mubr.f32.mxu0 0.0
        %1350 = vmatmul.mubr.f32.gmra.mrb[0].mxu0 %v1276
        %v1351 = vpop.f32.mrb[0].mxu0
        %v1352 = vadd.f32 0.0, %v1351
        %v1353 = vpop.f32.mrb[0].mxu0
        %v1354 = vadd.f32 0.0, %v1353
        %1355 = vdwg.mxu0
        %v1356 = vadd.f32 %v1282, %v1352
        %v1357 = vadd.f32 %v1283, %v1354
        %v1358 = vxor.u32 %v1356, 2147483648
        %v1359 = vxor.u32 %v1357, 2147483648
        %v1360 = vmul.f32 %v1358, 1.442695
        %v1361 = vpow.pop %v1360
        %v1362 = vmul.f32 %v1359, 1.442695
        %v1363 = vpow.pop %v1362
        %v1364 = vadd.f32 %v1361, 1.0
        %v1365 = vadd.f32 %v1363, 1.0
        %v1366 = vrcp.pop %v1364
        %v1367 = vmul.f32 1.0, %v1366
        %v1368 = vrcp.pop %v1365
        %v1369 = vmul.f32 1.0, %v1368
        %v1370 = vmul.f32 %v1367, %v1276
        %1371 = vmatprep.subr.mxu0 0.0
        %1372 = vmatpush1.msra.mxu0 %v756
        %1373 = vmatprep.subr.mxu0 0.0
        %1374 = vmatpush1.msra.mxu0 %v757
        %1375 = vmatprep.subr.mxu0 0.0
        %1376 = vmatpush1.msra.mxu0 %v758
        %1377 = vmatprep.subr.mxu0 0.0
        %1378 = vmatpush1.msra.mxu0 %v759
        %1379 = vmatprep.subr.mxu0 0.0
        %1380 = vmatpush1.msra.mxu0 %v760
        %1381 = vmatprep.subr.mxu0 0.0
        %1382 = vmatpush1.msra.mxu0 %v761
        %1383 = vmatprep.subr.mxu0 0.0
        %1384 = vmatpush1.msra.mxu0 %v762
        %1385 = vmatprep.subr.mxu0 0.0
        %1386 = vmatpush1.msra.mxu0 %v763
        %1387 = vmatprep.subr.mxu0 0.0
        %1388 = vmatpush1.msra.mxu0 %v764
        %1389 = vmatprep.subr.mxu0 0.0
        %1390 = vmatpush1.msra.mxu0 %v765
        %1391 = vmatprep.subr.mxu0 0.0
        %1392 = vmatpush1.msra.mxu0 %v766
        %1393 = vmatprep.subr.mxu0 0.0
        %1394 = vmatpush1.msra.mxu0 %v767
        %1395 = vmatprep.subr.mxu0 0.0
        %1396 = vmatpush1.msra.mxu0 %v768
        %1397 = vmatprep.subr.mxu0 0.0
        %1398 = vmatpush1.msra.mxu0 %v769
        %1399 = vmatprep.subr.mxu0 0.0
        %1400 = vmatpush1.msra.mxu0 %v770
        %1401 = vmatprep.subr.mxu0 0.0
        %1402 = vmatpush1.msra.mxu0 %v771
        %1403 = vmatprep.subr.mxu0 0.0
        %1404 = vmatpush1.msra.mxu0 0.0
        %1405 = vmatprep.subr.mxu0 0.0
        %1406 = vmatpush1.msra.mxu0 0.0
        %1407 = vmatprep.subr.mxu0 0.0
        %1408 = vmatpush1.msra.mxu0 0.0
        %1409 = vmatprep.subr.mxu0 0.0
        %1410 = vmatpush1.msra.mxu0 0.0
        %1411 = vmatprep.subr.mxu0 0.0
        %1412 = vmatpush1.msra.mxu0 0.0
        %1413 = vmatprep.subr.mxu0 0.0
        %1414 = vmatpush1.msra.mxu0 0.0
        %1415 = vmatprep.subr.mxu0 0.0
        %1416 = vmatpush1.msra.mxu0 0.0
        %1417 = vmatprep.subr.mxu0 0.0
        %1418 = vmatpush1.msra.mxu0 0.0
        %1419 = vmatprep.subr.mxu0 0.0
        %1420 = vmatpush1.msra.mxu0 0.0
        %1421 = vmatprep.subr.mxu0 0.0
        %1422 = vmatpush1.msra.mxu0 0.0
        %1423 = vmatprep.subr.mxu0 0.0
        %1424 = vmatpush1.msra.mxu0 0.0
        %1425 = vmatprep.subr.mxu0 0.0
        %1426 = vmatpush1.msra.mxu0 0.0
        %1427 = vmatprep.subr.mxu0 0.0
        %1428 = vmatpush1.msra.mxu0 0.0
        %1429 = vmatprep.subr.mxu0 0.0
        %1430 = vmatpush1.msra.mxu0 0.0
        %1431 = vmatprep.subr.mxu0 0.0
        %1432 = vmatpush1.msra.mxu0 0.0
        %1433 = vmatprep.subr.mxu0 0.0
        %1434 = vmatpush1.msra.mxu0 0.0
        %1435 = vmatprep.mubr.f32.mxu0 0.0
        %1436 = vmatmul.mubr.f32.gmra.mrb[0].mxu0 %v1370
        %v1437 = vpop.f32.mrb[0].mxu0
        %v1438 = vadd.f32 0.0, %v1437
        %v1439 = vpop.f32.mrb[0].mxu0
        %1440 = vdwg.mxu0
        %v1441 = vadd.f32 %v1284, %v1438
        %v1442 = vtanh.pop %v1441
        %v1443 = vsub.f32 %v1276, %v1442
        %v1444 = vmul.f32 %v1369, %v1443
        %v1445 = vadd.f32 %v1442, %v1444
        %s1446 = scalar_lea.vmem %s6, 24
        %1447 = vst [vmem:[%s1446] sm:$0xff] %v1445
        %s1448 = smul.u32 4, 3
        %s1449 = smul.addr %s1448, 8
        %s1450 = scalar_lea.vmem [#allocation2], %s1449
        %v1451 = vld [vmem:[%s1450] sm:$0xff]
        %v1452 = vld [vmem:[%s1450 + $0x8] sm:$0xff]
        %v1453 = vld [vmem:[%s1450 + $0x10] sm:$0xff]
        %1454 = vmatprep.subr.mxu0 %v725
        %1455 = vmatpush1.msra.mxu0 %v724
        %1456 = vmatprep.subr.mxu0 %v727
        %1457 = vmatpush1.msra.mxu0 %v726
        %1458 = vmatprep.subr.mxu0 %v729
        %1459 = vmatpush1.msra.mxu0 %v728
        %1460 = vmatprep.subr.mxu0 %v731
        %1461 = vmatpush1.msra.mxu0 %v730
        %1462 = vmatprep.subr.mxu0 %v733
        %1463 = vmatpush1.msra.mxu0 %v732
        %1464 = vmatprep.subr.mxu0 %v735
        %1465 = vmatpush1.msra.mxu0 %v734
        %1466 = vmatprep.subr.mxu0 %v737
        %1467 = vmatpush1.msra.mxu0 %v736
        %1468 = vmatprep.subr.mxu0 %v739
        %1469 = vmatpush1.msra.mxu0 %v738
        %1470 = vmatprep.subr.mxu0 %v741
        %1471 = vmatpush1.msra.mxu0 %v740
        %1472 = vmatprep.subr.mxu0 %v743
        %1473 = vmatpush1.msra.mxu0 %v742
        %1474 = vmatprep.subr.mxu0 %v745
        %1475 = vmatpush1.msra.mxu0 %v744
        %1476 = vmatprep.subr.mxu0 %v747
        %1477 = vmatpush1.msra.mxu0 %v746
        %1478 = vmatprep.subr.mxu0 %v749
        %1479 = vmatpush1.msra.mxu0 %v748
        %1480 = vmatprep.subr.mxu0 %v751
        %1481 = vmatpush1.msra.mxu0 %v750
        %1482 = vmatprep.subr.mxu0 %v753
        %1483 = vmatpush1.msra.mxu0 %v752
        %1484 = vmatprep.subr.mxu0 %v755
        %1485 = vmatpush1.msra.mxu0 %v754
        %1486 = vmatprep.subr.mxu0 0.0
        %1487 = vmatpush1.msra.mxu0 0.0
        %1488 = vmatprep.subr.mxu0 0.0
        %1489 = vmatpush1.msra.mxu0 0.0
        %1490 = vmatprep.subr.mxu0 0.0
        %1491 = vmatpush1.msra.mxu0 0.0
        %1492 = vmatprep.subr.mxu0 0.0
        %1493 = vmatpush1.msra.mxu0 0.0
        %1494 = vmatprep.subr.mxu0 0.0
        %1495 = vmatpush1.msra.mxu0 0.0
        %1496 = vmatprep.subr.mxu0 0.0
        %1497 = vmatpush1.msra.mxu0 0.0
        %1498 = vmatprep.subr.mxu0 0.0
        %1499 = vmatpush1.msra.mxu0 0.0
        %1500 = vmatprep.subr.mxu0 0.0
        %1501 = vmatpush1.msra.mxu0 0.0
        %1502 = vmatprep.subr.mxu0 0.0
        %1503 = vmatpush1.msra.mxu0 0.0
        %1504 = vmatprep.subr.mxu0 0.0
        %1505 = vmatpush1.msra.mxu0 0.0
        %1506 = vmatprep.subr.mxu0 0.0
        %1507 = vmatpush1.msra.mxu0 0.0
        %1508 = vmatprep.subr.mxu0 0.0
        %1509 = vmatpush1.msra.mxu0 0.0
        %1510 = vmatprep.subr.mxu0 0.0
        %1511 = vmatpush1.msra.mxu0 0.0
        %1512 = vmatprep.subr.mxu0 0.0
        %1513 = vmatpush1.msra.mxu0 0.0
        %1514 = vmatprep.subr.mxu0 0.0
        %1515 = vmatpush1.msra.mxu0 0.0
        %1516 = vmatprep.subr.mxu0 0.0
        %1517 = vmatpush1.msra.mxu0 0.0
        %1518 = vmatprep.mubr.f32.mxu0 0.0
        %1519 = vmatmul.mubr.f32.gmra.mrb[0].mxu0 %v1445
        %v1520 = vpop.f32.mrb[0].mxu0
        %v1521 = vadd.f32 0.0, %v1520
        %v1522 = vpop.f32.mrb[0].mxu0
        %v1523 = vadd.f32 0.0, %v1522
        %1524 = vdwg.mxu0
        %v1525 = vadd.f32 %v1451, %v1521
        %v1526 = vadd.f32 %v1452, %v1523
        %v1527 = vxor.u32 %v1525, 2147483648
        %v1528 = vxor.u32 %v1526, 2147483648
        %v1529 = vmul.f32 %v1527, 1.442695
        %v1530 = vpow.pop %v1529
        %v1531 = vmul.f32 %v1528, 1.442695
        %v1532 = vpow.pop %v1531
        %v1533 = vadd.f32 %v1530, 1.0
        %v1534 = vadd.f32 %v1532, 1.0
        %v1535 = vrcp.pop %v1533
        %v1536 = vmul.f32 1.0, %v1535
        %v1537 = vrcp.pop %v1534
        %v1538 = vmul.f32 1.0, %v1537
        %v1539 = vmul.f32 %v1536, %v1445
        %1540 = vmatprep.subr.mxu0 0.0
        %1541 = vmatpush1.msra.mxu0 %v756
        %1542 = vmatprep.subr.mxu0 0.0
        %1543 = vmatpush1.msra.mxu0 %v757
        %1544 = vmatprep.subr.mxu0 0.0
        %1545 = vmatpush1.msra.mxu0 %v758
        %1546 = vmatprep.subr.mxu0 0.0
        %1547 = vmatpush1.msra.mxu0 %v759
        %1548 = vmatprep.subr.mxu0 0.0
        %1549 = vmatpush1.msra.mxu0 %v760
        %1550 = vmatprep.subr.mxu0 0.0
        %1551 = vmatpush1.msra.mxu0 %v761
        %1552 = vmatprep.subr.mxu0 0.0
        %1553 = vmatpush1.msra.mxu0 %v762
        %1554 = vmatprep.subr.mxu0 0.0
        %1555 = vmatpush1.msra.mxu0 %v763
        %1556 = vmatprep.subr.mxu0 0.0
        %1557 = vmatpush1.msra.mxu0 %v764
        %1558 = vmatprep.subr.mxu0 0.0
        %1559 = vmatpush1.msra.mxu0 %v765
        %1560 = vmatprep.subr.mxu0 0.0
        %1561 = vmatpush1.msra.mxu0 %v766
        %1562 = vmatprep.subr.mxu0 0.0
        %1563 = vmatpush1.msra.mxu0 %v767
        %1564 = vmatprep.subr.mxu0 0.0
        %1565 = vmatpush1.msra.mxu0 %v768
        %1566 = vmatprep.subr.mxu0 0.0
        %1567 = vmatpush1.msra.mxu0 %v769
        %1568 = vmatprep.subr.mxu0 0.0
        %1569 = vmatpush1.msra.mxu0 %v770
        %1570 = vmatprep.subr.mxu0 0.0
        %1571 = vmatpush1.msra.mxu0 %v771
        %1572 = vmatprep.subr.mxu0 0.0
        %1573 = vmatpush1.msra.mxu0 0.0
        %1574 = vmatprep.subr.mxu0 0.0
        %1575 = vmatpush1.msra.mxu0 0.0
        %1576 = vmatprep.subr.mxu0 0.0
        %1577 = vmatpush1.msra.mxu0 0.0
        %1578 = vmatprep.subr.mxu0 0.0
        %1579 = vmatpush1.msra.mxu0 0.0
        %1580 = vmatprep.subr.mxu0 0.0
        %1581 = vmatpush1.msra.mxu0 0.0
        %1582 = vmatprep.subr.mxu0 0.0
        %1583 = vmatpush1.msra.mxu0 0.0
        %1584 = vmatprep.subr.mxu0 0.0
        %1585 = vmatpush1.msra.mxu0 0.0
        %1586 = vmatprep.subr.mxu0 0.0
        %1587 = vmatpush1.msra.mxu0 0.0
        %1588 = vmatprep.subr.mxu0 0.0
        %1589 = vmatpush1.msra.mxu0 0.0
        %1590 = vmatprep.subr.mxu0 0.0
        %1591 = vmatpush1.msra.mxu0 0.0
        %1592 = vmatprep.subr.mxu0 0.0
        %1593 = vmatpush1.msra.mxu0 0.0
        %1594 = vmatprep.subr.mxu0 0.0
        %1595 = vmatpush1.msra.mxu0 0.0
        %1596 = vmatprep.subr.mxu0 0.0
        %1597 = vmatpush1.msra.mxu0 0.0
        %1598 = vmatprep.subr.mxu0 0.0
        %1599 = vmatpush1.msra.mxu0 0.0
        %1600 = vmatprep.subr.mxu0 0.0
        %1601 = vmatpush1.msra.mxu0 0.0
        %1602 = vmatprep.subr.mxu0 0.0
        %1603 = vmatpush1.msra.mxu0 0.0
        %1604 = vmatprep.mubr.f32.mxu0 0.0
        %1605 = vmatmul.mubr.f32.gmra.mrb[0].mxu0 %v1539
        %v1606 = vpop.f32.mrb[0].mxu0
        %v1607 = vadd.f32 0.0, %v1606
        %v1608 = vpop.f32.mrb[0].mxu0
        %1609 = vdwg.mxu0
        %v1610 = vadd.f32 %v1453, %v1607
        %v1611 = vtanh.pop %v1610
        %v1612 = vsub.f32 %v1445, %v1611
        %v1613 = vmul.f32 %v1538, %v1612
        %v1614 = vadd.f32 %v1611, %v1613
        %s1615 = scalar_lea.vmem %s6, 32
        %1616 = vst [vmem:[%s1615] sm:$0xff] %v1614
        %s1617 = smul.u32 5, 3
        %s1618 = smul.addr %s1617, 8
        %s1619 = scalar_lea.vmem [#allocation2], %s1618
        %v1620 = vld [vmem:[%s1619] sm:$0xff]
        %v1621 = vld [vmem:[%s1619 + $0x8] sm:$0xff]
        %v1622 = vld [vmem:[%s1619 + $0x10] sm:$0xff]
        %1623 = vmatprep.subr.mxu0 %v725
        %1624 = vmatpush1.msra.mxu0 %v724
        %1625 = vmatprep.subr.mxu0 %v727
        %1626 = vmatpush1.msra.mxu0 %v726
        %1627 = vmatprep.subr.mxu0 %v729
        %1628 = vmatpush1.msra.mxu0 %v728
        %1629 = vmatprep.subr.mxu0 %v731
        %1630 = vmatpush1.msra.mxu0 %v730
        %1631 = vmatprep.subr.mxu0 %v733
        %1632 = vmatpush1.msra.mxu0 %v732
        %1633 = vmatprep.subr.mxu0 %v735
        %1634 = vmatpush1.msra.mxu0 %v734
        %1635 = vmatprep.subr.mxu0 %v737
        %1636 = vmatpush1.msra.mxu0 %v736
        %1637 = vmatprep.subr.mxu0 %v739
        %1638 = vmatpush1.msra.mxu0 %v738
        %1639 = vmatprep.subr.mxu0 %v741
        %1640 = vmatpush1.msra.mxu0 %v740
        %1641 = vmatprep.subr.mxu0 %v743
        %1642 = vmatpush1.msra.mxu0 %v742
        %1643 = vmatprep.subr.mxu0 %v745
        %1644 = vmatpush1.msra.mxu0 %v744
        %1645 = vmatprep.subr.mxu0 %v747
        %1646 = vmatpush1.msra.mxu0 %v746
        %1647 = vmatprep.subr.mxu0 %v749
        %1648 = vmatpush1.msra.mxu0 %v748
        %1649 = vmatprep.subr.mxu0 %v751
        %1650 = vmatpush1.msra.mxu0 %v750
        %1651 = vmatprep.subr.mxu0 %v753
        %1652 = vmatpush1.msra.mxu0 %v752
        %1653 = vmatprep.subr.mxu0 %v755
        %1654 = vmatpush1.msra.mxu0 %v754
        %1655 = vmatprep.subr.mxu0 0.0
        %1656 = vmatpush1.msra.mxu0 0.0
        %1657 = vmatprep.subr.mxu0 0.0
        %1658 = vmatpush1.msra.mxu0 0.0
        %1659 = vmatprep.subr.mxu0 0.0
        %1660 = vmatpush1.msra.mxu0 0.0
        %1661 = vmatprep.subr.mxu0 0.0
        %1662 = vmatpush1.msra.mxu0 0.0
        %1663 = vmatprep.subr.mxu0 0.0
        %1664 = vmatpush1.msra.mxu0 0.0
        %1665 = vmatprep.subr.mxu0 0.0
        %1666 = vmatpush1.msra.mxu0 0.0
        %1667 = vmatprep.subr.mxu0 0.0
        %1668 = vmatpush1.msra.mxu0 0.0
        %1669 = vmatprep.subr.mxu0 0.0
        %1670 = vmatpush1.msra.mxu0 0.0
        %1671 = vmatprep.subr.mxu0 0.0
        %1672 = vmatpush1.msra.mxu0 0.0
        %1673 = vmatprep.subr.mxu0 0.0
        %1674 = vmatpush1.msra.mxu0 0.0
        %1675 = vmatprep.subr.mxu0 0.0
        %1676 = vmatpush1.msra.mxu0 0.0
        %1677 = vmatprep.subr.mxu0 0.0
        %1678 = vmatpush1.msra.mxu0 0.0
        %1679 = vmatprep.subr.mxu0 0.0
        %1680 = vmatpush1.msra.mxu0 0.0
        %1681 = vmatprep.subr.mxu0 0.0
        %1682 = vmatpush1.msra.mxu0 0.0
        %1683 = vmatprep.subr.mxu0 0.0
        %1684 = vmatpush1.msra.mxu0 0.0
        %1685 = vmatprep.subr.mxu0 0.0
        %1686 = vmatpush1.msra.mxu0 0.0
        %1687 = vmatprep.mubr.f32.mxu0 0.0
        %1688 = vmatmul.mubr.f32.gmra.mrb[0].mxu0 %v1614
        %v1689 = vpop.f32.mrb[0].mxu0
        %v1690 = vadd.f32 0.0, %v1689
        %v1691 = vpop.f32.mrb[0].mxu0
        %v1692 = vadd.f32 0.0, %v1691
        %1693 = vdwg.mxu0
        %v1694 = vadd.f32 %v1620, %v1690
        %v1695 = vadd.f32 %v1621, %v1692
        %v1696 = vxor.u32 %v1694, 2147483648
        %v1697 = vxor.u32 %v1695, 2147483648
        %v1698 = vmul.f32 %v1696, 1.442695
        %v1699 = vpow.pop %v1698
        %v1700 = vmul.f32 %v1697, 1.442695
        %v1701 = vpow.pop %v1700
        %v1702 = vadd.f32 %v1699, 1.0
        %v1703 = vadd.f32 %v1701, 1.0
        %v1704 = vrcp.pop %v1702
        %v1705 = vmul.f32 1.0, %v1704
        %v1706 = vrcp.pop %v1703
        %v1707 = vmul.f32 1.0, %v1706
        %v1708 = vmul.f32 %v1705, %v1614
        %1709 = vmatprep.subr.mxu0 0.0
        %1710 = vmatpush1.msra.mxu0 %v756
        %1711 = vmatprep.subr.mxu0 0.0
        %1712 = vmatpush1.msra.mxu0 %v757
        %1713 = vmatprep.subr.mxu0 0.0
        %1714 = vmatpush1.msra.mxu0 %v758
        %1715 = vmatprep.subr.mxu0 0.0
        %1716 = vmatpush1.msra.mxu0 %v759
        %1717 = vmatprep.subr.mxu0 0.0
        %1718 = vmatpush1.msra.mxu0 %v760
        %1719 = vmatprep.subr.mxu0 0.0
        %1720 = vmatpush1.msra.mxu0 %v761
        %1721 = vmatprep.subr.mxu0 0.0
        %1722 = vmatpush1.msra.mxu0 %v762
        %1723 = vmatprep.subr.mxu0 0.0
        %1724 = vmatpush1.msra.mxu0 %v763
        %1725 = vmatprep.subr.mxu0 0.0
        %1726 = vmatpush1.msra.mxu0 %v764
        %1727 = vmatprep.subr.mxu0 0.0
        %1728 = vmatpush1.msra.mxu0 %v765
        %1729 = vmatprep.subr.mxu0 0.0
        %1730 = vmatpush1.msra.mxu0 %v766
        %1731 = vmatprep.subr.mxu0 0.0
        %1732 = vmatpush1.msra.mxu0 %v767
        %1733 = vmatprep.subr.mxu0 0.0
        %1734 = vmatpush1.msra.mxu0 %v768
        %1735 = vmatprep.subr.mxu0 0.0
        %1736 = vmatpush1.msra.mxu0 %v769
        %1737 = vmatprep.subr.mxu0 0.0
        %1738 = vmatpush1.msra.mxu0 %v770
        %1739 = vmatprep.subr.mxu0 0.0
        %1740 = vmatpush1.msra.mxu0 %v771
        %1741 = vmatprep.subr.mxu0 0.0
        %1742 = vmatpush1.msra.mxu0 0.0
        %1743 = vmatprep.subr.mxu0 0.0
        %1744 = vmatpush1.msra.mxu0 0.0
        %1745 = vmatprep.subr.mxu0 0.0
        %1746 = vmatpush1.msra.mxu0 0.0
        %1747 = vmatprep.subr.mxu0 0.0
        %1748 = vmatpush1.msra.mxu0 0.0
        %1749 = vmatprep.subr.mxu0 0.0
        %1750 = vmatpush1.msra.mxu0 0.0
        %1751 = vmatprep.subr.mxu0 0.0
        %1752 = vmatpush1.msra.mxu0 0.0
        %1753 = vmatprep.subr.mxu0 0.0
        %1754 = vmatpush1.msra.mxu0 0.0
        %1755 = vmatprep.subr.mxu0 0.0
        %1756 = vmatpush1.msra.mxu0 0.0
        %1757 = vmatprep.subr.mxu0 0.0
        %1758 = vmatpush1.msra.mxu0 0.0
        %1759 = vmatprep.subr.mxu0 0.0
        %1760 = vmatpush1.msra.mxu0 0.0
        %1761 = vmatprep.subr.mxu0 0.0
        %1762 = vmatpush1.msra.mxu0 0.0
        %1763 = vmatprep.subr.mxu0 0.0
        %1764 = vmatpush1.msra.mxu0 0.0
        %1765 = vmatprep.subr.mxu0 0.0
        %1766 = vmatpush1.msra.mxu0 0.0
        %1767 = vmatprep.subr.mxu0 0.0
        %1768 = vmatpush1.msra.mxu0 0.0
        %1769 = vmatprep.subr.mxu0 0.0
        %1770 = vmatpush1.msra.mxu0 0.0
        %1771 = vmatprep.subr.mxu0 0.0
        %1772 = vmatpush1.msra.mxu0 0.0
        %1773 = vmatprep.mubr.f32.mxu0 0.0
        %1774 = vmatmul.mubr.f32.gmra.mrb[0].mxu0 %v1708
        %v1775 = vpop.f32.mrb[0].mxu0
        %v1776 = vadd.f32 0.0, %v1775
        %v1777 = vpop.f32.mrb[0].mxu0
        %1778 = vdwg.mxu0
        %v1779 = vadd.f32 %v1622, %v1776
        %v1780 = vtanh.pop %v1779
        %v1781 = vsub.f32 %v1614, %v1780
        %v1782 = vmul.f32 %v1707, %v1781
        %v1783 = vadd.f32 %v1780, %v1782
        %s1784 = scalar_lea.vmem %s6, 40
        %1785 = vst [vmem:[%s1784] sm:$0xff] %v1783
        %s1786 = smul.u32 6, 3
        %s1787 = smul.addr %s1786, 8
        %s1788 = scalar_lea.vmem [#allocation2], %s1787
        %v1789 = vld [vmem:[%s1788] sm:$0xff]
        %v1790 = vld [vmem:[%s1788 + $0x8] sm:$0xff]
        %v1791 = vld [vmem:[%s1788 + $0x10] sm:$0xff]
        %1792 = vmatprep.subr.mxu0 %v725
        %1793 = vmatpush1.msra.mxu0 %v724
        %1794 = vmatprep.subr.mxu0 %v727
        %1795 = vmatpush1.msra.mxu0 %v726
        %1796 = vmatprep.subr.mxu0 %v729
        %1797 = vmatpush1.msra.mxu0 %v728
        %1798 = vmatprep.subr.mxu0 %v731
        %1799 = vmatpush1.msra.mxu0 %v730
        %1800 = vmatprep.subr.mxu0 %v733
        %1801 = vmatpush1.msra.mxu0 %v732
        %1802 = vmatprep.subr.mxu0 %v735
        %1803 = vmatpush1.msra.mxu0 %v734
        %1804 = vmatprep.subr.mxu0 %v737
        %1805 = vmatpush1.msra.mxu0 %v736
        %1806 = vmatprep.subr.mxu0 %v739
        %1807 = vmatpush1.msra.mxu0 %v738
        %1808 = vmatprep.subr.mxu0 %v741
        %1809 = vmatpush1.msra.mxu0 %v740
        %1810 = vmatprep.subr.mxu0 %v743
        %1811 = vmatpush1.msra.mxu0 %v742
        %1812 = vmatprep.subr.mxu0 %v745
        %1813 = vmatpush1.msra.mxu0 %v744
        %1814 = vmatprep.subr.mxu0 %v747
        %1815 = vmatpush1.msra.mxu0 %v746
        %1816 = vmatprep.subr.mxu0 %v749
        %1817 = vmatpush1.msra.mxu0 %v748
        %1818 = vmatprep.subr.mxu0 %v751
        %1819 = vmatpush1.msra.mxu0 %v750
        %1820 = vmatprep.subr.mxu0 %v753
        %1821 = vmatpush1.msra.mxu0 %v752
        %1822 = vmatprep.subr.mxu0 %v755
        %1823 = vmatpush1.msra.mxu0 %v754
        %1824 = vmatprep.subr.mxu0 0.0
        %1825 = vmatpush1.msra.mxu0 0.0
        %1826 = vmatprep.subr.mxu0 0.0
        %1827 = vmatpush1.msra.mxu0 0.0
        %1828 = vmatprep.subr.mxu0 0.0
        %1829 = vmatpush1.msra.mxu0 0.0
        %1830 = vmatprep.subr.mxu0 0.0
        %1831 = vmatpush1.msra.mxu0 0.0
        %1832 = vmatprep.subr.mxu0 0.0
        %1833 = vmatpush1.msra.mxu0 0.0
        %1834 = vmatprep.subr.mxu0 0.0
        %1835 = vmatpush1.msra.mxu0 0.0
        %1836 = vmatprep.subr.mxu0 0.0
        %1837 = vmatpush1.msra.mxu0 0.0
        %1838 = vmatprep.subr.mxu0 0.0
        %1839 = vmatpush1.msra.mxu0 0.0
        %1840 = vmatprep.subr.mxu0 0.0
        %1841 = vmatpush1.msra.mxu0 0.0
        %1842 = vmatprep.subr.mxu0 0.0
        %1843 = vmatpush1.msra.mxu0 0.0
        %1844 = vmatprep.subr.mxu0 0.0
        %1845 = vmatpush1.msra.mxu0 0.0
        %1846 = vmatprep.subr.mxu0 0.0
        %1847 = vmatpush1.msra.mxu0 0.0
        %1848 = vmatprep.subr.mxu0 0.0
        %1849 = vmatpush1.msra.mxu0 0.0
        %1850 = vmatprep.subr.mxu0 0.0
        %1851 = vmatpush1.msra.mxu0 0.0
        %1852 = vmatprep.subr.mxu0 0.0
        %1853 = vmatpush1.msra.mxu0 0.0
        %1854 = vmatprep.subr.mxu0 0.0
        %1855 = vmatpush1.msra.mxu0 0.0
        %1856 = vmatprep.mubr.f32.mxu0 0.0
        %1857 = vmatmul.mubr.f32.gmra.mrb[0].mxu0 %v1783
        %v1858 = vpop.f32.mrb[0].mxu0
        %v1859 = vadd.f32 0.0, %v1858
        %v1860 = vpop.f32.mrb[0].mxu0
        %v1861 = vadd.f32 0.0, %v1860
        %1862 = vdwg.mxu0
        %v1863 = vadd.f32 %v1789, %v1859
        %v1864 = vadd.f32 %v1790, %v1861
        %v1865 = vxor.u32 %v1863, 2147483648
        %v1866 = vxor.u32 %v1864, 2147483648
        %v1867 = vmul.f32 %v1865, 1.442695
        %v1868 = vpow.pop %v1867
        %v1869 = vmul.f32 %v1866, 1.442695
        %v1870 = vpow.pop %v1869
        %v1871 = vadd.f32 %v1868, 1.0
        %v1872 = vadd.f32 %v1870, 1.0
        %v1873 = vrcp.pop %v1871
        %v1874 = vmul.f32 1.0, %v1873
        %v1875 = vrcp.pop %v1872
        %v1876 = vmul.f32 1.0, %v1875
        %v1877 = vmul.f32 %v1874, %v1783
        %1878 = vmatprep.subr.mxu0 0.0
        %1879 = vmatpush1.msra.mxu0 %v756
        %1880 = vmatprep.subr.mxu0 0.0
        %1881 = vmatpush1.msra.mxu0 %v757
        %1882 = vmatprep.subr.mxu0 0.0
        %1883 = vmatpush1.msra.mxu0 %v758
        %1884 = vmatprep.subr.mxu0 0.0
        %1885 = vmatpush1.msra.mxu0 %v759
        %1886 = vmatprep.subr.mxu0 0.0
        %1887 = vmatpush1.msra.mxu0 %v760
        %1888 = vmatprep.subr.mxu0 0.0
        %1889 = vmatpush1.msra.mxu0 %v761
        %1890 = vmatprep.subr.mxu0 0.0
        %1891 = vmatpush1.msra.mxu0 %v762
        %1892 = vmatprep.subr.mxu0 0.0
        %1893 = vmatpush1.msra.mxu0 %v763
        %1894 = vmatprep.subr.mxu0 0.0
        %1895 = vmatpush1.msra.mxu0 %v764
        %1896 = vmatprep.subr.mxu0 0.0
        %1897 = vmatpush1.msra.mxu0 %v765
        %1898 = vmatprep.subr.mxu0 0.0
        %1899 = vmatpush1.msra.mxu0 %v766
        %1900 = vmatprep.subr.mxu0 0.0
        %1901 = vmatpush1.msra.mxu0 %v767
        %1902 = vmatprep.subr.mxu0 0.0
        %1903 = vmatpush1.msra.mxu0 %v768
        %1904 = vmatprep.subr.mxu0 0.0
        %1905 = vmatpush1.msra.mxu0 %v769
        %1906 = vmatprep.subr.mxu0 0.0
        %1907 = vmatpush1.msra.mxu0 %v770
        %1908 = vmatprep.subr.mxu0 0.0
        %1909 = vmatpush1.msra.mxu0 %v771
        %1910 = vmatprep.subr.mxu0 0.0
        %1911 = vmatpush1.msra.mxu0 0.0
        %1912 = vmatprep.subr.mxu0 0.0
        %1913 = vmatpush1.msra.mxu0 0.0
        %1914 = vmatprep.subr.mxu0 0.0
        %1915 = vmatpush1.msra.mxu0 0.0
        %1916 = vmatprep.subr.mxu0 0.0
        %1917 = vmatpush1.msra.mxu0 0.0
        %1918 = vmatprep.subr.mxu0 0.0
        %1919 = vmatpush1.msra.mxu0 0.0
        %1920 = vmatprep.subr.mxu0 0.0
        %1921 = vmatpush1.msra.mxu0 0.0
        %1922 = vmatprep.subr.mxu0 0.0
        %1923 = vmatpush1.msra.mxu0 0.0
        %1924 = vmatprep.subr.mxu0 0.0
        %1925 = vmatpush1.msra.mxu0 0.0
        %1926 = vmatprep.subr.mxu0 0.0
        %1927 = vmatpush1.msra.mxu0 0.0
        %1928 = vmatprep.subr.mxu0 0.0
        %1929 = vmatpush1.msra.mxu0 0.0
        %1930 = vmatprep.subr.mxu0 0.0
        %1931 = vmatpush1.msra.mxu0 0.0
        %1932 = vmatprep.subr.mxu0 0.0
        %1933 = vmatpush1.msra.mxu0 0.0
        %1934 = vmatprep.subr.mxu0 0.0
        %1935 = vmatpush1.msra.mxu0 0.0
        %1936 = vmatprep.subr.mxu0 0.0
        %1937 = vmatpush1.msra.mxu0 0.0
        %1938 = vmatprep.subr.mxu0 0.0
        %1939 = vmatpush1.msra.mxu0 0.0
        %1940 = vmatprep.subr.mxu0 0.0
        %1941 = vmatpush1.msra.mxu0 0.0
        %1942 = vmatprep.mubr.f32.mxu0 0.0
        %1943 = vmatmul.mubr.f32.gmra.mrb[0].mxu0 %v1877
        %v1944 = vpop.f32.mrb[0].mxu0
        %v1945 = vadd.f32 0.0, %v1944
        %v1946 = vpop.f32.mrb[0].mxu0
        %1947 = vdwg.mxu0
        %v1948 = vadd.f32 %v1791, %v1945
        %v1949 = vtanh.pop %v1948
        %v1950 = vsub.f32 %v1783, %v1949
        %v1951 = vmul.f32 %v1876, %v1950
        %v1952 = vadd.f32 %v1949, %v1951
        %s1953 = scalar_lea.vmem %s6, 48
        %1954 = vst [vmem:[%s1953] sm:$0xff] %v1952
        %s1955 = smul.u32 7, 3
        %s1956 = smul.addr %s1955, 8
        %s1957 = scalar_lea.vmem [#allocation2], %s1956
        %v1958 = vld [vmem:[%s1957] sm:$0xff]
        %v1959 = vld [vmem:[%s1957 + $0x8] sm:$0xff]
        %v1960 = vld [vmem:[%s1957 + $0x10] sm:$0xff]
        %1961 = vmatprep.subr.mxu0 %v725
        %1962 = vmatpush1.msra.mxu0 %v724
        %1963 = vmatprep.subr.mxu0 %v727
        %1964 = vmatpush1.msra.mxu0 %v726
        %1965 = vmatprep.subr.mxu0 %v729
        %1966 = vmatpush1.msra.mxu0 %v728
        %1967 = vmatprep.subr.mxu0 %v731
        %1968 = vmatpush1.msra.mxu0 %v730
        %1969 = vmatprep.subr.mxu0 %v733
        %1970 = vmatpush1.msra.mxu0 %v732
        %1971 = vmatprep.subr.mxu0 %v735
        %1972 = vmatpush1.msra.mxu0 %v734
        %1973 = vmatprep.subr.mxu0 %v737
        %1974 = vmatpush1.msra.mxu0 %v736
        %1975 = vmatprep.subr.mxu0 %v739
        %1976 = vmatpush1.msra.mxu0 %v738
        %1977 = vmatprep.subr.mxu0 %v741
        %1978 = vmatpush1.msra.mxu0 %v740
        %1979 = vmatprep.subr.mxu0 %v743
        %1980 = vmatpush1.msra.mxu0 %v742
        %1981 = vmatprep.subr.mxu0 %v745
        %1982 = vmatpush1.msra.mxu0 %v744
        %1983 = vmatprep.subr.mxu0 %v747
        %1984 = vmatpush1.msra.mxu0 %v746
        %1985 = vmatprep.subr.mxu0 %v749
        %1986 = vmatpush1.msra.mxu0 %v748
        %1987 = vmatprep.subr.mxu0 %v751
        %1988 = vmatpush1.msra.mxu0 %v750
        %1989 = vmatprep.subr.mxu0 %v753
        %1990 = vmatpush1.msra.mxu0 %v752
        %1991 = vmatprep.subr.mxu0 %v755
        %1992 = vmatpush1.msra.mxu0 %v754
        %1993 = vmatprep.subr.mxu0 0.0
        %1994 = vmatpush1.msra.mxu0 0.0
        %1995 = vmatprep.subr.mxu0 0.0
        %1996 = vmatpush1.msra.mxu0 0.0
        %1997 = vmatprep.subr.mxu0 0.0
        %1998 = vmatpush1.msra.mxu0 0.0
        %1999 = vmatprep.subr.mxu0 0.0
        %2000 = vmatpush1.msra.mxu0 0.0
        %2001 = vmatprep.subr.mxu0 0.0
        %2002 = vmatpush1.msra.mxu0 0.0
        %2003 = vmatprep.subr.mxu0 0.0
        %2004 = vmatpush1.msra.mxu0 0.0
        %2005 = vmatprep.subr.mxu0 0.0
        %2006 = vmatpush1.msra.mxu0 0.0
        %2007 = vmatprep.subr.mxu0 0.0
        %2008 = vmatpush1.msra.mxu0 0.0
        %2009 = vmatprep.subr.mxu0 0.0
        %2010 = vmatpush1.msra.mxu0 0.0
        %2011 = vmatprep.subr.mxu0 0.0
        %2012 = vmatpush1.msra.mxu0 0.0
        %2013 = vmatprep.subr.mxu0 0.0
        %2014 = vmatpush1.msra.mxu0 0.0
        %2015 = vmatprep.subr.mxu0 0.0
        %2016 = vmatpush1.msra.mxu0 0.0
        %2017 = vmatprep.subr.mxu0 0.0
        %2018 = vmatpush1.msra.mxu0 0.0
        %2019 = vmatprep.subr.mxu0 0.0
        %2020 = vmatpush1.msra.mxu0 0.0
        %2021 = vmatprep.subr.mxu0 0.0
        %2022 = vmatpush1.msra.mxu0 0.0
        %2023 = vmatprep.subr.mxu0 0.0
        %2024 = vmatpush1.msra.mxu0 0.0
        %2025 = vmatprep.mubr.f32.mxu0 0.0
        %2026 = vmatmul.mubr.f32.gmra.mrb[0].mxu0 %v1952
        %v2027 = vpop.f32.mrb[0].mxu0
        %v2028 = vadd.f32 0.0, %v2027
        %v2029 = vpop.f32.mrb[0].mxu0
        %v2030 = vadd.f32 0.0, %v2029
        %2031 = vdwg.mxu0
        %v2032 = vadd.f32 %v1958, %v2028
        %v2033 = vadd.f32 %v1959, %v2030
        %v2034 = vxor.u32 %v2032, 2147483648
        %v2035 = vxor.u32 %v2033, 2147483648
        %v2036 = vmul.f32 %v2034, 1.442695
        %v2037 = vpow.pop %v2036
        %v2038 = vmul.f32 %v2035, 1.442695
        %v2039 = vpow.pop %v2038
        %v2040 = vadd.f32 %v2037, 1.0
        %v2041 = vadd.f32 %v2039, 1.0
        %v2042 = vrcp.pop %v2040
        %v2043 = vmul.f32 1.0, %v2042
        %v2044 = vrcp.pop %v2041
        %v2045 = vmul.f32 1.0, %v2044
        %v2046 = vmul.f32 %v2043, %v1952
        %2047 = vmatprep.subr.mxu0 0.0
        %2048 = vmatpush1.msra.mxu0 %v756
        %2049 = vmatprep.subr.mxu0 0.0
        %2050 = vmatpush1.msra.mxu0 %v757
        %2051 = vmatprep.subr.mxu0 0.0
        %2052 = vmatpush1.msra.mxu0 %v758
        %2053 = vmatprep.subr.mxu0 0.0
        %2054 = vmatpush1.msra.mxu0 %v759
        %2055 = vmatprep.subr.mxu0 0.0
        %2056 = vmatpush1.msra.mxu0 %v760
        %2057 = vmatprep.subr.mxu0 0.0
        %2058 = vmatpush1.msra.mxu0 %v761
        %2059 = vmatprep.subr.mxu0 0.0
        %2060 = vmatpush1.msra.mxu0 %v762
        %2061 = vmatprep.subr.mxu0 0.0
        %2062 = vmatpush1.msra.mxu0 %v763
        %2063 = vmatprep.subr.mxu0 0.0
        %2064 = vmatpush1.msra.mxu0 %v764
        %2065 = vmatprep.subr.mxu0 0.0
        %2066 = vmatpush1.msra.mxu0 %v765
        %2067 = vmatprep.subr.mxu0 0.0
        %2068 = vmatpush1.msra.mxu0 %v766
        %2069 = vmatprep.subr.mxu0 0.0
        %2070 = vmatpush1.msra.mxu0 %v767
        %2071 = vmatprep.subr.mxu0 0.0
        %2072 = vmatpush1.msra.mxu0 %v768
        %2073 = vmatprep.subr.mxu0 0.0
        %2074 = vmatpush1.msra.mxu0 %v769
        %2075 = vmatprep.subr.mxu0 0.0
        %2076 = vmatpush1.msra.mxu0 %v770
        %2077 = vmatprep.subr.mxu0 0.0
        %2078 = vmatpush1.msra.mxu0 %v771
        %2079 = vmatprep.subr.mxu0 0.0
        %2080 = vmatpush1.msra.mxu0 0.0
        %2081 = vmatprep.subr.mxu0 0.0
        %2082 = vmatpush1.msra.mxu0 0.0
        %2083 = vmatprep.subr.mxu0 0.0
        %2084 = vmatpush1.msra.mxu0 0.0
        %2085 = vmatprep.subr.mxu0 0.0
        %2086 = vmatpush1.msra.mxu0 0.0
        %2087 = vmatprep.subr.mxu0 0.0
        %2088 = vmatpush1.msra.mxu0 0.0
        %2089 = vmatprep.subr.mxu0 0.0
        %2090 = vmatpush1.msra.mxu0 0.0
        %2091 = vmatprep.subr.mxu0 0.0
        %2092 = vmatpush1.msra.mxu0 0.0
        %2093 = vmatprep.subr.mxu0 0.0
        %2094 = vmatpush1.msra.mxu0 0.0
        %2095 = vmatprep.subr.mxu0 0.0
        %2096 = vmatpush1.msra.mxu0 0.0
        %2097 = vmatprep.subr.mxu0 0.0
        %2098 = vmatpush1.msra.mxu0 0.0
        %2099 = vmatprep.subr.mxu0 0.0
        %2100 = vmatpush1.msra.mxu0 0.0
        %2101 = vmatprep.subr.mxu0 0.0
        %2102 = vmatpush1.msra.mxu0 0.0
        %2103 = vmatprep.subr.mxu0 0.0
        %2104 = vmatpush1.msra.mxu0 0.0
        %2105 = vmatprep.subr.mxu0 0.0
        %2106 = vmatpush1.msra.mxu0 0.0
        %2107 = vmatprep.subr.mxu0 0.0
        %2108 = vmatpush1.msra.mxu0 0.0
        %2109 = vmatprep.subr.mxu0 0.0
        %2110 = vmatpush1.msra.mxu0 0.0
        %2111 = vmatprep.mubr.f32.mxu0 0.0
        %2112 = vmatmul.mubr.f32.gmra.mrb[0].mxu0 %v2046
        %v2113 = vpop.f32.mrb[0].mxu0
        %v2114 = vadd.f32 0.0, %v2113
        %v2115 = vpop.f32.mrb[0].mxu0
        %2116 = vdwg.mxu0
        %v2117 = vadd.f32 %v1960, %v2114
        %v2118 = vtanh.pop %v2117
        %v2119 = vsub.f32 %v1952, %v2118
        %v2120 = vmul.f32 %v2045, %v2119
        %v2121 = vadd.f32 %v2118, %v2120
        %s2122 = scalar_lea.vmem %s6, 56
        %2123 = vst [vmem:[%s2122] sm:$0xff] %v2121
        %2124 = vst [vmem:[%s388] sm:$0xff] %v2121
        %p2125 = scmp.lt.s32.totalorder %s25, 1
        %s2126 = scalar_select %p2125, %s25, 1
        %s2127 = smul.addr %s2126, 8
        %s2128 = scalar_lea.vmem %s7, %s2127
        // Predicated region
        $region57: #{encoder_forward.1} parent=43 // pred_check
          %p2129 = pneg %p189
        $region58: #{encoder_forward.1} parent=43 // pred_check_branch
          %2131 = sbr.rel (%p2129) target = $region60
        $region59: #{encoder_forward.1} parent=43 // pred_region
          _
        $region60: #{encoder_forward.1} parent=43 // pred_fallthru
          _
        // Predicated region
        $region61: #{encoder_forward.1} parent=43 // pred_check
          %p2132 = pneg %p215
        $region62: #{encoder_forward.1} parent=43 // pred_check_branch
          %2134 = sbr.rel (%p2132) target = $region64
        $region63: #{encoder_forward.1} parent=43 // pred_region
          _
        $region64: #{encoder_forward.1} parent=43 // pred_fallthru
          _
        // Predicated region
        $region65: #{encoder_forward.1} parent=43 // pred_check
          %p2135 = pneg %p189
        $region66: #{encoder_forward.1} parent=43 // pred_check_branch
          %2137 = sbr.rel (%p2135) target = $region68
        $region67: #{encoder_forward.1} parent=43 // pred_region
          _
        $region68: #{encoder_forward.1} parent=43 // pred_fallthru
          _
      $region44: #{encoder_forward.1} parent=5 // pred_fallthru
        _
      %p2138 = scmp.le.s32.totalorder 2, %s20
      // Predicated region
      $region69: #{encoder_forward.1} parent=5 // pred_check
        %p2139 = pneg %p2138
      $region70: #{encoder_forward.1} parent=5 // pred_check_branch
        %2141 = sbr.rel (%p2139) target = $region72
      $region71: #{encoder_forward.1} parent=5 // pred_region
        %s2142 = ssub.s32 %s20, 2
        // Predicated region
        $region73: #{encoder_forward.1} parent=71 // pred_check
          %p2143 = pneg %p221
        $region74: #{encoder_forward.1} parent=71 // pred_check_branch
          %2145 = sbr.rel (%p2143) target = $region76
        $region75: #{encoder_forward.1} parent=71 // pred_region
          %p2146 = scmp.lt.s32.totalorder %s26, 1
          %s2147 = scalar_select %p2146, %s26, 1
          %s2148 = smul.addr %s2147, 8
          %s2149 = scalar_lea.vmem %s7, %s2148
        $region76: #{encoder_forward.1} parent=71 // pred_fallthru
          _
      $region72: #{encoder_forward.1} parent=5 // pred_fallthru
        _
    $region6: #{encoder_forward.1} parent=1 // loop_footer
      %s24 = sadd.s32 1, %s20
    $region7: #{encoder_forward.1} parent=1 // loop_footer_branch
      %19 = sbr.rel target = $region3
    $region8: #{encoder_forward.1} parent=1 // loop_exit
      _
    %2150 = vsyncpa [#allocation4], 1
    %s2151 = scalar_lea.sflag [#allocation4], 1
    %2152 = vsyncpa %s2151, 1
    %2153 = vsyncpa [#allocation6], 1
    %s2154 = scalar_lea.sflag [#allocation6], 1
    %2155 = vsyncpa %s2154, 1

</llo_original>
